<compile_context>
chip_gen: v7x
topology: tpu7x:2x2x1
jax: 0.10.0
libtpu: 0.0.40
codegen_flags: <defaults>
</compile_context>

<pallas_src>
import functools

import numpy as np
import jax
import jax.numpy as jnp
from jax.experimental import pallas as pl
from jax.experimental.pallas import tpu as pltpu

META_V_DIM = 8
STATE_DIM = 16
ACTION_DIM = 6
HYPER_HIDDEN = 32
DYN_HIDDEN = 32
BATCH = 4

_SLAB = 128  # lane-dense output width
_HEAD_KEYS = ("aw1", "cw1", "ab1", "cb1", "aw2", "cw2", "ab2", "cb2", "e2", "r2")
_COMPILER_PARAMS = pltpu.CompilerParams(vmem_limit_bytes=8 * 1024 * 1024)


# ----------------------------------------------------------------------------
# In-kernel building blocks
# ----------------------------------------------------------------------------
def _hyper_l1(meta, w1c, b1c):
    """Fused hyper layer-1 for all heads (and both nets in evaluate)."""
    return jnp.maximum(
        jnp.dot(meta, w1c, preferred_element_type=jnp.float32) + b1c, 0.0)


def _dyn_net(hid, state_exp, aw1, cw1, ab1, cb1, aw2, cw2, ab2, cb2, e2, r2, *, D):
    """One hyper-generated dynamic 2-layer MLP.

    hid       (B, 4H)   relu'd hyper layer-1 activations, heads [w1|b1|w2|b2]
    state_exp (B, S*D)  state[b, s] replicated across the D lanes of segment s
    aw*/cw*   per-head hyper layer-2 weights (bf16) / biases (f32)
    e2        (D, D*O)  0/1 expansion  (h replicated across each d-segment)
    r2        (D*O,128) 0/1 reduction  (d-major segments -> lanes 0..O-1)
    Returns (B, 128) with the net's outputs in lanes 0..O-1, zeros elsewhere.
    """
    f32 = jnp.float32
    H = hid.shape[1] // 4
    hw1, hb1 = hid[:, 0:H], hid[:, H:2 * H]
    hw2, hb2 = hid[:, 2 * H:3 * H], hid[:, 3 * H:4 * H]

    # Hyper layer 2, per head (no block-diagonal zeros, lane-0 aligned slabs).
    w1flat = jnp.dot(hw1, aw1.astype(f32), preferred_element_type=f32) + cw1  # (B,S*D)
    b1dyn = jnp.dot(hb1, ab1.astype(f32), preferred_element_type=f32) + cb1   # (B,D)
    w2flat = jnp.dot(hw2, aw2.astype(f32), preferred_element_type=f32) + cw2  # (B,D*O)
    b2dyn = jnp.dot(hb2, ab2.astype(f32), preferred_element_type=f32) + cb2   # (B,128)

    # Dynamic layer 1: one wide multiply + log2(S) lane-halving folds
    # (stride-D segmented sum over s) instead of an S-deep dependent chain.
    prod = w1flat * state_exp
    width = prod.shape[1]
    while width > D:
        half = width // 2
        prod = prod[:, :half] + prod[:, half:]
        width = half
    h = jnp.maximum(prod + b1dyn, 0.0)                                        # (B,D)

    # Dynamic layer 2 on the otherwise-idle MXU: expand h across the O columns
    # of each d-segment, multiply by the generated w2, reduce with a 0/1
    # matrix straight into a lane-dense 128-wide slab, add the generated b2.
    h_exp = jnp.dot(h, e2.astype(f32), preferred_element_type=f32)            # (B,D*O)
    out = jnp.dot(h_exp * w2flat, r2.astype(f32), preferred_element_type=f32)  # (B,128)
    return out + b2dyn


def _softmax_stats(logits128, lane, O):
    """Masked log_softmax / softmax over lanes [0, O) of a (B,128) slab."""
    valid = lane < O
    neg = jnp.where(valid, logits128, -1e30)
    m = jnp.max(neg, axis=-1, keepdims=True)
    e = jnp.where(valid, jnp.exp(neg - m), 0.0)
    s = jnp.sum(e, axis=-1, keepdims=True)
    logp = jnp.where(valid, neg - m - jnp.log(s), 0.0)
    probs = e / s
    return logp, probs


# ----------------------------------------------------------------------------
# Kernels
# ----------------------------------------------------------------------------
def _act_kernel(meta_ref, state_ref, w1c_ref, b1c_ref, e1_ref,
                aw1_ref, cw1_ref, ab1_ref, cb1_ref, aw2_ref, cw2_ref,
                ab2_ref, cb2_ref, e2_ref, r2_ref, out_ref, *, D, O):
    f32 = jnp.float32
    hid = _hyper_l1(meta_ref[...], w1c_ref[...], b1c_ref[...])
    state_exp = jnp.dot(state_ref[...], e1_ref[...].astype(f32),
                        preferred_element_type=f32)
    logits = _dyn_net(hid, state_exp,
                      aw1_ref[...], cw1_ref[...], ab1_ref[...], cb1_ref[...],
                      aw2_ref[...], cw2_ref[...], ab2_ref[...], cb2_ref[...],
                      e2_ref[...], r2_ref[...], D=D)
    lane = jax.lax.broadcasted_iota(jnp.int32, logits.shape, 1)
    logp, probs = _softmax_stats(logits, lane, O)
    # Single lane-dense (B, 128) output slab: [logits | logp | probs | pad].
    out_ref[...] = jnp.zeros_like(out_ref)
    out_ref[:, 0:O] = logits[:, 0:O]
    out_ref[:, 8:8 + O] = logp[:, 0:O]
    out_ref[:, 16:16 + O] = probs[:, 0:O]


def _eval_kernel(meta_ref, state_ref, action_ref, w1c2_ref, b1c2_ref, e1_ref,
                 a_aw1, a_cw1, a_ab1, a_cb1, a_aw2, a_cw2, a_ab2, a_cb2, a_e2, a_r2,
                 c_aw1, c_cw1, c_ab1, c_cb1, c_aw2, c_cw2, c_ab2, c_cb2, c_e2, c_r2,
                 out_ref, *, D, O):
    f32 = jnp.float32
    half = w1c2_ref.shape[1] // 2
    # One fused (M, 2*4H) hyper-L1 dot for actor + critic side by side.
    hid2 = _hyper_l1(meta_ref[...], w1c2_ref[...], b1c2_ref[...])
    state_exp = jnp.dot(state_ref[...], e1_ref[...].astype(f32),
                        preferred_element_type=f32)
    logits = _dyn_net(hid2[:, 0:half], state_exp,
                      a_aw1[...], a_cw1[...], a_ab1[...], a_cb1[...],
                      a_aw2[...], a_cw2[...], a_ab2[...], a_cb2[...],
                      a_e2[...], a_r2[...], D=D)
    value128 = _dyn_net(hid2[:, half:2 * half], state_exp,
                        c_aw1[...], c_cw1[...], c_ab1[...], c_cb1[...],
                        c_aw2[...], c_cw2[...], c_ab2[...], c_cb2[...],
                        c_e2[...], c_r2[...], D=D)
    lane = jax.lax.broadcasted_iota(jnp.int32, logits.shape, 1)
    logp, probs = _softmax_stats(logits, lane, O)
    onehot = (lane == action_ref[...]).astype(f32)                 # action (B,1) i32
    alogp = jnp.sum(logp * onehot, axis=-1, keepdims=True)         # (B,1)
    entropy = -jnp.sum(probs * logp, axis=-1, keepdims=True)       # (B,1)
    value = value128[:, 0:1]                                       # (B,1)
    # Lane-dense slab: lane0=action_logprob, lane1=value, lane2=entropy.
    out_ref[...] = (jnp.where(lane == 0, alogp, 0.0)
                    + jnp.where(lane == 1, value, 0.0)
                    + jnp.where(lane == 2, entropy, 0.0))


# ----------------------------------------------------------------------------
# Wrappers (grid-free pallas_call; whole problem resident in VMEM)
# ----------------------------------------------------------------------------
def _dims(packed):
    D = packed["ab1"].shape[1]
    S = packed["aw1"].shape[1] // D
    O = packed["aw2"].shape[1] // D
    assert S & (S - 1) == 0, "state_dim must be a power of two for the fold reduce"
    assert O <= 8, "output slab layout assumes out_dim <= 8"
    return D, O


def actor_forward(packed, meta_v, state):
    """Fused hypernet + dynamic MLP + softmax stats for one net.
    Returns (B,128): lanes [0,O)=logits, [8,8+O)=log_softmax, [16,16+O)=softmax."""
    B = meta_v.shape[0]
    D, O = _dims(packed)
    return pl.pallas_call(
        functools.partial(_act_kernel, D=D, O=O),
        out_shape=jax.ShapeDtypeStruct((B, _SLAB), jnp.float32),
        compiler_params=_COMPILER_PARAMS,
    )(meta_v, state, packed["w1c"], packed["b1c"], packed["e1"],
      *(packed[k] for k in _HEAD_KEYS))


def eval_forward(packed_a, packed_c, joint, meta_v, state, action):
    """Fused actor+critic forward + distribution epilogue.
    Returns (B,128): lane0=action_logprob, lane1=state_value, lane2=entropy."""
    B = meta_v.shape[0]
    D, O = _dims(packed_a)
    action2d = action.reshape(B, 1).astype(jnp.int32)
    return pl.pallas_call(
        functools.partial(_eval_kernel, D=D, O=O),
        out_shape=jax.ShapeDtypeStruct((B, _SLAB), jnp.float32),
        compiler_params=_COMPILER_PARAMS,
    )(meta_v, state, action2d, joint["w1c2"], joint["b1c2"], packed_a["e1"],
      *(packed_a[k] for k in _HEAD_KEYS),
      *(packed_c[k] for k in _HEAD_KEYS))


@functools.partial(jax.jit, static_argnames=("ret_prob",))
def act(packed_actor, meta_v, state, key, ret_prob=False):
    _, O = _dims(packed_actor)
    slab = actor_forward(packed_actor, meta_v, state)
    logits, logp, probs = slab[:, 0:O], slab[:, 8:8 + O], slab[:, 16:16 + O]
    action = jax.random.categorical(key, logits, axis=-1)
    action_logprob = jnp.take_along_axis(logp, action[:, None], axis=-1)[:, 0]
    if ret_prob:
        return action, action_logprob, probs
    return action, action_logprob


@jax.jit
def evaluate(packed_actor, packed_critic, joint, meta_v, state, action):
    slab = eval_forward(packed_actor, packed_critic, joint, meta_v, state, action)
    return slab[:, 0], slab[:, 1:2], slab[:, 2]


# ----------------------------------------------------------------------------
# Parameter init (raw per-head, torch layout) and kernel-side packing
# ----------------------------------------------------------------------------
def init_hypernet_params(key, meta_dim, in_dim, out_dim, hh, dh):
    """Raw per-head params of HyperNetwork2Layer (heads: w1, b1, w2, b2)."""
    head_sizes = [in_dim * dh, dh, dh * out_dim, out_dim]
    keys = jax.random.split(key, 4 * len(head_sizes))
    l1_w, l1_b, l2_w, l2_b = [], [], [], []
    for i, hs in enumerate(head_sizes):
        k1, k2, k3, k4 = keys[4 * i:4 * i + 4]
        l1_w.append(jax.random.normal(k1, (meta_dim, hh), jnp.float32)
                    * (1.0 / np.sqrt(meta_dim)))
        l1_b.append(jax.random.normal(k2, (hh,), jnp.float32) * 0.01)
        # The kernel stores hyper layer-2 weights in bf16 (dominant HBM bytes);
        # round here so the reference and the kernel use identical values.
        w2 = jax.random.normal(k3, (hh, hs), jnp.float32) * (1.0 / np.sqrt(hh))
        l2_w.append(w2.astype(jnp.bfloat16).astype(jnp.float32))
        l2_b.append(jax.random.normal(k4, (hs,), jnp.float32) * 0.01)
    return {"l1_w": l1_w, "l1_b": l1_b, "l2_w": l2_w, "l2_b": l2_b,
            "meta_dim": meta_dim, "in_dim": in_dim, "out_dim": out_dim,
            "hh": hh, "dh": dh}


def pack_hypernet_params(raw):
    """Pack one HyperNetwork2Layer into kernel inputs: per-head hyper-L2
    weights (bf16, no structural zeros) plus exact 0/1 expansion/reduction
    constants for the dynamic MLP."""
    S, D, O, H = raw["in_dim"], raw["dh"], raw["out_dim"], raw["hh"]
    f32, bf16 = jnp.float32, jnp.bfloat16

    w1c = jnp.concatenate(raw["l1_w"], axis=1)                    # (M, 4H)
    b1c = jnp.concatenate(raw["l1_b"])[None, :]                   # (1, 4H)

    aw1 = raw["l2_w"][0].astype(bf16)                             # (H, S*D)
    cw1 = raw["l2_b"][0][None, :].astype(f32)
    ab1 = raw["l2_w"][1].astype(bf16)                             # (H, D)
    cb1 = raw["l2_b"][1][None, :].astype(f32)
    aw2 = raw["l2_w"][2].astype(bf16)                             # (H, D*O)
    cw2 = raw["l2_b"][2][None, :].astype(f32)
    ab2 = np.zeros((H, _SLAB), np.float32)                        # pad O -> 128 lanes
    ab2[:, :O] = np.asarray(raw["l2_w"][3])
    cb2 = np.zeros((1, _SLAB), np.float32)
    cb2[0, :O] = np.asarray(raw["l2_b"][3])

    # 0/1 constants (exact in bf16):
    #   e1[s, s*D + d] = 1 : expands state across the D lanes of segment s
    #   e2[d, d*O + o] = 1 : replicates h across the O columns of segment d
    #   r2[d*O + o, o] = 1 : reduces d-major segments into lanes 0..O-1
    e1 = np.zeros((S, S * D), np.float32)
    for s in range(S):
        e1[s, s * D:(s + 1) * D] = 1.0
    e2 = np.zeros((D, D * O), np.float32)
    for d in range(D):
        e2[d, d * O:(d + 1) * O] = 1.0
    r2 = np.zeros((D * O, _SLAB), np.float32)
    for d in range(D):
        for o in range(O):
            r2[d * O + o, o] = 1.0

    return {"w1c": w1c, "b1c": b1c,
            "aw1": aw1, "cw1": cw1, "ab1": ab1, "cb1": cb1,
            "aw2": aw2, "cw2": cw2,
            "ab2": jnp.asarray(ab2, bf16), "cb2": jnp.asarray(cb2, f32),
            "e1": jnp.asarray(e1, bf16), "e2": jnp.asarray(e2, bf16),
            "r2": jnp.asarray(r2, bf16)}


def pack_joint_l1(packed_a, packed_c):
    """Concatenate actor/critic hyper layer-1 so evaluate() runs one fused dot."""
    return {"w1c2": jnp.concatenate([packed_a["w1c"], packed_c["w1c"]], axis=1),
            "b1c2": jnp.concatenate([packed_a["b1c"], packed_c["b1c"]], axis=1)}


# ----------------------------------------------------------------------------
# Pure-JAX reference with exact PyTorch HyperNetwork2Layer semantics
# ----------------------------------------------------------------------------
def hypernet_ref(raw, meta_v, state):
    in_dim, out_dim, dh = raw["in_dim"], raw["out_dim"], raw["dh"]
    outs = []
    for i in range(4):
        hid = jax.nn.relu(meta_v @ raw["l1_w"][i] + raw["l1_b"][i])
        outs.append(hid @ raw["l2_w"][i] + raw["l2_b"][i])
    w1f, b1f, w2f, b2f = outs
    w1 = w1f.reshape(-1, in_dim, dh)          # torch .view(S, D)
    w2 = w2f.reshape(-1, dh, out_dim)         # torch .view(D, O)
    h = jax.nn.relu(jnp.einsum("bs,bsd->bd", state, w1) + b1f)
    return jnp.einsum("bd,bdo->bo", h, w2) + b2f


def _check(got, want, name, rtol=1e-3, atol=1e-3):
    got = np.asarray(got)
    want = np.asarray(want)
    if not np.allclose(got, want, rtol=rtol, atol=atol):
        err = float(np.max(np.abs(got - want)))
        raise AssertionError(f"Pallas mismatch for {name}: max abs err {err:.3e}")


if __name__ == "__main__":
    key = jax.random.PRNGKey(0)
    k_actor, k_critic, k_meta, k_state, k_sample = jax.random.split(key, 5)

    raw_actor = init_hypernet_params(
        k_actor, META_V_DIM, STATE_DIM, ACTION_DIM, HYPER_HIDDEN, DYN_HIDDEN)
    raw_critic = init_hypernet_params(
        k_critic, META_V_DIM, STATE_DIM, 1, HYPER_HIDDEN, DYN_HIDDEN)
    packed_actor = pack_hypernet_params(raw_actor)
    packed_critic = pack_hypernet_params(raw_critic)
    joint = pack_joint_l1(packed_actor, packed_critic)

    meta_v = jax.random.normal(k_meta, (BATCH, META_V_DIM), jnp.float32)
    state = jax.random.normal(k_state, (BATCH, STATE_DIM), jnp.float32)

    # References (exact PyTorch semantics, same bf16-representable weights).
    logits_ref = hypernet_ref(raw_actor, meta_v, state)
    values_ref = hypernet_ref(raw_critic, meta_v, state)
    logp_ref = jax.nn.log_softmax(logits_ref, axis=-1)
    probs_ref = jax.nn.softmax(logits_ref, axis=-1)

    # Actor slab (logits / log_softmax / softmax) vs reference.
    slab = jax.block_until_ready(actor_forward(packed_actor, meta_v, state))
    _check(slab[:, :ACTION_DIM], logits_ref, "logits")
    _check(slab[:, 8:8 + ACTION_DIM], logp_ref, "log_softmax")
    _check(slab[:, 16:16 + ACTION_DIM], probs_ref, "softmax")

    # HyperAC2Layer.act and .evaluate.
    action, action_logprob, probs = act(packed_actor, meta_v, state,
                                        k_sample, ret_prob=True)
    alogp, state_values, entropy = evaluate(packed_actor, packed_critic, joint,
                                            meta_v, state, action)
    jax.block_until_ready((action, action_logprob, probs,
                           alogp, state_values, entropy))

    alogp_ref = jnp.take_along_axis(logp_ref, np.asarray(action)[:, None],
                                    axis=-1)[:, 0]
    ent_ref = -jnp.sum(probs_ref * logp_ref, axis=-1)
    _check(action_logprob, alogp_ref, "act.action_logprob")
    _check(probs, probs_ref, "act.probs")
    _check(alogp, alogp_ref, "evaluate.action_logprobs")
    _check(state_values, values_ref, "evaluate.state_values")
    _check(entropy, ent_ref, "evaluate.dist_entropy")

    assert action.shape == (BATCH,)
    assert state_values.shape == (BATCH, 1)
    assert probs.shape == (BATCH, ACTION_DIM)
    print("KERNEL_OK")
</pallas_src>

<mosaic_0001>
module attributes {stable_mosaic.version = 11 : i64} {
  func.func @_act_kernel(%arg0: memref<4x8xf32, #tpu.memory_space<vmem>>, %arg1: memref<4x16xf32, #tpu.memory_space<vmem>>, %arg2: memref<8x128xf32, #tpu.memory_space<vmem>>, %arg3: memref<1x128xf32, #tpu.memory_space<vmem>>, %arg4: memref<16x512xbf16, #tpu.memory_space<vmem>>, %arg5: memref<32x512xbf16, #tpu.memory_space<vmem>>, %arg6: memref<1x512xf32, #tpu.memory_space<vmem>>, %arg7: memref<32x32xbf16, #tpu.memory_space<vmem>>, %arg8: memref<1x32xf32, #tpu.memory_space<vmem>>, %arg9: memref<32x192xbf16, #tpu.memory_space<vmem>>, %arg10: memref<1x192xf32, #tpu.memory_space<vmem>>, %arg11: memref<32x128xbf16, #tpu.memory_space<vmem>>, %arg12: memref<1x128xf32, #tpu.memory_space<vmem>>, %arg13: memref<32x192xbf16, #tpu.memory_space<vmem>>, %arg14: memref<192x128xbf16, #tpu.memory_space<vmem>>, %arg15: memref<4x128xf32, #tpu.memory_space<vmem>>) attributes {dimension_semantics = [], scalar_prefetch = 0 : i64, scratch_operands = 0 : i64, tpu.core_type = #tpu.core_type<tc>} {
    %c0 = arith.constant 0 : index
    %c0_0 = arith.constant 0 : index
    %0 = vector.load %arg0[%c0, %c0_0] : memref<4x8xf32, #tpu.memory_space<vmem>>, vector<4x8xf32>
    %c0_1 = arith.constant 0 : index
    %c0_2 = arith.constant 0 : index
    %1 = vector.load %arg2[%c0_1, %c0_2] : memref<8x128xf32, #tpu.memory_space<vmem>>, vector<8x128xf32>
    %c0_3 = arith.constant 0 : index
    %c0_4 = arith.constant 0 : index
    %2 = vector.load %arg3[%c0_3, %c0_4] : memref<1x128xf32, #tpu.memory_space<vmem>>, vector<1x128xf32>
    %cst = arith.constant dense<0.000000e+00> : vector<4x128xf32>
    %3 = tpu.matmul %0, %1, %cst {dimension_numbers = #tpu.dot_dimension_numbers<[1], [0], [0], [1], [0, 0, 1, 1], [], []>} : vector<4x8xf32>, vector<8x128xf32>, vector<4x128xf32> -> vector<4x128xf32>
    %4 = vector.broadcast %2 : vector<1x128xf32> to vector<4x128xf32>
    %5 = arith.addf %3, %4 : vector<4x128xf32>
    %cst_5 = arith.constant 0.000000e+00 : f32
    %6 = vector.broadcast %cst_5 : f32 to vector<4x128xf32>
    %7 = arith.maximumf %5, %6 : vector<4x128xf32>
    %c0_6 = arith.constant 0 : index
    %c0_7 = arith.constant 0 : index
    %8 = vector.load %arg1[%c0_6, %c0_7] : memref<4x16xf32, #tpu.memory_space<vmem>>, vector<4x16xf32>
    %c0_8 = arith.constant 0 : index
    %c0_9 = arith.constant 0 : index
    %9 = vector.load %arg4[%c0_8, %c0_9] : memref<16x512xbf16, #tpu.memory_space<vmem>>, vector<16x512xbf16>
    %10 = arith.extf %9 : vector<16x512xbf16> to vector<16x512xf32>
    %cst_10 = arith.constant dense<0.000000e+00> : vector<4x512xf32>
    %11 = tpu.matmul %8, %10, %cst_10 {dimension_numbers = #tpu.dot_dimension_numbers<[1], [0], [0], [1], [0, 0, 1, 1], [], []>} : vector<4x16xf32>, vector<16x512xf32>, vector<4x512xf32> -> vector<4x512xf32>
    %c0_11 = arith.constant 0 : index
    %c0_12 = arith.constant 0 : index
    %12 = vector.load %arg5[%c0_11, %c0_12] : memref<32x512xbf16, #tpu.memory_space<vmem>>, vector<32x512xbf16>
    %c0_13 = arith.constant 0 : index
    %c0_14 = arith.constant 0 : index
    %13 = vector.load %arg6[%c0_13, %c0_14] : memref<1x512xf32, #tpu.memory_space<vmem>>, vector<1x512xf32>
    %c0_15 = arith.constant 0 : index
    %c0_16 = arith.constant 0 : index
    %14 = vector.load %arg7[%c0_15, %c0_16] : memref<32x32xbf16, #tpu.memory_space<vmem>>, vector<32x32xbf16>
    %c0_17 = arith.constant 0 : index
    %c0_18 = arith.constant 0 : index
    %15 = vector.load %arg8[%c0_17, %c0_18] : memref<1x32xf32, #tpu.memory_space<vmem>>, vector<1x32xf32>
    %c0_19 = arith.constant 0 : index
    %c0_20 = arith.constant 0 : index
    %16 = vector.load %arg9[%c0_19, %c0_20] : memref<32x192xbf16, #tpu.memory_space<vmem>>, vector<32x192xbf16>
    %c0_21 = arith.constant 0 : index
    %c0_22 = arith.constant 0 : index
    %17 = vector.load %arg10[%c0_21, %c0_22] : memref<1x192xf32, #tpu.memory_space<vmem>>, vector<1x192xf32>
    %c0_23 = arith.constant 0 : index
    %c0_24 = arith.constant 0 : index
    %18 = vector.load %arg11[%c0_23, %c0_24] : memref<32x128xbf16, #tpu.memory_space<vmem>>, vector<32x128xbf16>
    %c0_25 = arith.constant 0 : index
    %c0_26 = arith.constant 0 : index
    %19 = vector.load %arg12[%c0_25, %c0_26] : memref<1x128xf32, #tpu.memory_space<vmem>>, vector<1x128xf32>
    %c0_27 = arith.constant 0 : index
    %c0_28 = arith.constant 0 : index
    %20 = vector.load %arg13[%c0_27, %c0_28] : memref<32x192xbf16, #tpu.memory_space<vmem>>, vector<32x192xbf16>
    %c0_29 = arith.constant 0 : index
    %c0_30 = arith.constant 0 : index
    %21 = vector.load %arg14[%c0_29, %c0_30] : memref<192x128xbf16, #tpu.memory_space<vmem>>, vector<192x128xbf16>
    %22 = vector.extract_strided_slice %7 {offsets = [0, 0], sizes = [4, 32], strides = [1, 1]} : vector<4x128xf32> to vector<4x32xf32>
    %23 = vector.extract_strided_slice %7 {offsets = [0, 32], sizes = [4, 32], strides = [1, 1]} : vector<4x128xf32> to vector<4x32xf32>
    %24 = vector.extract_strided_slice %7 {offsets = [0, 64], sizes = [4, 32], strides = [1, 1]} : vector<4x128xf32> to vector<4x32xf32>
    %25 = vector.extract_strided_slice %7 {offsets = [0, 96], sizes = [4, 32], strides = [1, 1]} : vector<4x128xf32> to vector<4x32xf32>
    %26 = arith.extf %12 : vector<32x512xbf16> to vector<32x512xf32>
    %cst_31 = arith.constant dense<0.000000e+00> : vector<4x512xf32>
    %27 = tpu.matmul %22, %26, %cst_31 {dimension_numbers = #tpu.dot_dimension_numbers<[1], [0], [0], [1], [0, 0, 1, 1], [], []>} : vector<4x32xf32>, vector<32x512xf32>, vector<4x512xf32> -> vector<4x512xf32>
    %28 = vector.broadcast %13 : vector<1x512xf32> to vector<4x512xf32>
    %29 = arith.addf %27, %28 : vector<4x512xf32>
    %30 = arith.extf %14 : vector<32x32xbf16> to vector<32x32xf32>
    %cst_32 = arith.constant dense<0.000000e+00> : vector<4x32xf32>
    %31 = tpu.matmul %23, %30, %cst_32 {dimension_numbers = #tpu.dot_dimension_numbers<[1], [0], [0], [1], [0, 0, 1, 1], [], []>} : vector<4x32xf32>, vector<32x32xf32>, vector<4x32xf32> -> vector<4x32xf32>
    %32 = vector.broadcast %15 : vector<1x32xf32> to vector<4x32xf32>
    %33 = arith.addf %31, %32 : vector<4x32xf32>
    %34 = arith.extf %16 : vector<32x192xbf16> to vector<32x192xf32>
    %cst_33 = arith.constant dense<0.000000e+00> : vector<4x192xf32>
    %35 = tpu.matmul %24, %34, %cst_33 {dimension_numbers = #tpu.dot_dimension_numbers<[1], [0], [0], [1], [0, 0, 1, 1], [], []>} : vector<4x32xf32>, vector<32x192xf32>, vector<4x192xf32> -> vector<4x192xf32>
    %36 = vector.broadcast %17 : vector<1x192xf32> to vector<4x192xf32>
    %37 = arith.addf %35, %36 : vector<4x192xf32>
    %38 = arith.extf %18 : vector<32x128xbf16> to vector<32x128xf32>
    %cst_34 = arith.constant dense<0.000000e+00> : vector<4x128xf32>
    %39 = tpu.matmul %25, %38, %cst_34 {dimension_numbers = #tpu.dot_dimension_numbers<[1], [0], [0], [1], [0, 0, 1, 1], [], []>} : vector<4x32xf32>, vector<32x128xf32>, vector<4x128xf32> -> vector<4x128xf32>
    %40 = vector.broadcast %19 : vector<1x128xf32> to vector<4x128xf32>
    %41 = arith.addf %39, %40 : vector<4x128xf32>
    %42 = arith.mulf %29, %11 : vector<4x512xf32>
    %43 = vector.extract_strided_slice %42 {offsets = [0, 0], sizes = [4, 256], strides = [1, 1]} : vector<4x512xf32> to vector<4x256xf32>
    %44 = vector.extract_strided_slice %42 {offsets = [0, 256], sizes = [4, 256], strides = [1, 1]} : vector<4x512xf32> to vector<4x256xf32>
    %45 = arith.addf %43, %44 : vector<4x256xf32>
    %46 = vector.extract_strided_slice %45 {offsets = [0, 0], sizes = [4, 128], strides = [1, 1]} : vector<4x256xf32> to vector<4x128xf32>
    %47 = vector.extract_strided_slice %45 {offsets = [0, 128], sizes = [4, 128], strides = [1, 1]} : vector<4x256xf32> to vector<4x128xf32>
    %48 = arith.addf %46, %47 : vector<4x128xf32>
    %49 = vector.extract_strided_slice %48 {offsets = [0, 0], sizes = [4, 64], strides = [1, 1]} : vector<4x128xf32> to vector<4x64xf32>
    %50 = vector.extract_strided_slice %48 {offsets = [0, 64], sizes = [4, 64], strides = [1, 1]} : vector<4x128xf32> to vector<4x64xf32>
    %51 = arith.addf %49, %50 : vector<4x64xf32>
    %52 = vector.extract_strided_slice %51 {offsets = [0, 0], sizes = [4, 32], strides = [1, 1]} : vector<4x64xf32> to vector<4x32xf32>
    %53 = vector.extract_strided_slice %51 {offsets = [0, 32], sizes = [4, 32], strides = [1, 1]} : vector<4x64xf32> to vector<4x32xf32>
    %54 = arith.addf %52, %53 : vector<4x32xf32>
    %55 = arith.addf %54, %33 : vector<4x32xf32>
    %cst_35 = arith.constant 0.000000e+00 : f32
    %56 = vector.broadcast %cst_35 : f32 to vector<4x32xf32>
    %57 = arith.maximumf %55, %56 : vector<4x32xf32>
    %58 = arith.extf %20 : vector<32x192xbf16> to vector<32x192xf32>
    %cst_36 = arith.constant dense<0.000000e+00> : vector<4x192xf32>
    %59 = tpu.matmul %57, %58, %cst_36 {dimension_numbers = #tpu.dot_dimension_numbers<[1], [0], [0], [1], [0, 0, 1, 1], [], []>} : vector<4x32xf32>, vector<32x192xf32>, vector<4x192xf32> -> vector<4x192xf32>
    %60 = arith.mulf %59, %37 : vector<4x192xf32>
    %61 = arith.extf %21 : vector<192x128xbf16> to vector<192x128xf32>
    %cst_37 = arith.constant dense<0.000000e+00> : vector<4x128xf32>
    %62 = tpu.matmul %60, %61, %cst_37 {dimension_numbers = #tpu.dot_dimension_numbers<[1], [0], [0], [1], [0, 0, 1, 1], [], []>} : vector<4x192xf32>, vector<192x128xf32>, vector<4x128xf32> -> vector<4x128xf32>
    %63 = arith.addf %62, %41 : vector<4x128xf32>
    %64 = tpu.iota {dimensions = array<i32: 1>} : vector<4x128xi32>
    %c6_i32 = arith.constant 6 : i32
    %65 = vector.broadcast %c6_i32 : i32 to vector<4x128xi32>
    %66 = arith.cmpi slt, %64, %65 : vector<4x128xi32>
    %cst_38 = arith.constant -1.000000e+30 : f32
    %67 = vector.broadcast %cst_38 : f32 to vector<4x128xf32>
    %68 = arith.select %66, %63, %67 : vector<4x128xi1>, vector<4x128xf32>
    %cst_39 = arith.constant dense<0xFF800000> : vector<4xf32>
    %69 = vector.multi_reduction <maximumf>, %68, %cst_39 [1] : vector<4x128xf32> to vector<4xf32>
    %70 = vector.shape_cast %69 : vector<4xf32> to vector<4x1xf32>
    %71 = vector.broadcast %70 : vector<4x1xf32> to vector<4x128xf32>
    %72 = arith.subf %68, %71 : vector<4x128xf32>
    %73 = math.exp %72 : vector<4x128xf32>
    %cst_40 = arith.constant 0.000000e+00 : f32
    %74 = vector.broadcast %cst_40 : f32 to vector<4x128xf32>
    %75 = arith.select %66, %73, %74 : vector<4x128xi1>, vector<4x128xf32>
    %cst_41 = arith.constant dense<0.000000e+00> : vector<4xf32>
    %76 = vector.multi_reduction <add>, %75, %cst_41 [1] : vector<4x128xf32> to vector<4xf32>
    %77 = vector.shape_cast %76 : vector<4xf32> to vector<4x1xf32>
    %78 = vector.broadcast %70 : vector<4x1xf32> to vector<4x128xf32>
    %79 = arith.subf %68, %78 : vector<4x128xf32>
    %80 = math.log %77 : vector<4x1xf32>
    %81 = vector.broadcast %80 : vector<4x1xf32> to vector<4x128xf32>
    %82 = arith.subf %79, %81 : vector<4x128xf32>
    %cst_42 = arith.constant 0.000000e+00 : f32
    %83 = vector.broadcast %cst_42 : f32 to vector<4x128xf32>
    %84 = arith.select %66, %82, %83 : vector<4x128xi1>, vector<4x128xf32>
    %85 = vector.broadcast %77 : vector<4x1xf32> to vector<4x128xf32>
    %86 = arith.divf %75, %85 : vector<4x128xf32>
    %cst_43 = arith.constant 0.000000e+00 : f32
    %87 = vector.broadcast %cst_43 : f32 to vector<4x128xf32>
    %c0_44 = arith.constant 0 : index
    %c0_45 = arith.constant 0 : index
    %88 = vector.load %arg15[%c0_44, %c0_45] : memref<4x128xf32, #tpu.memory_space<vmem>>, vector<4x128xf32>
    tpu.vector_store %arg15[%c0_44, %c0_45], %87 {strides = array<i32>} : memref<4x128xf32, #tpu.memory_space<vmem>>, vector<4x128xf32>,
    %89 = vector.extract_strided_slice %63 {offsets = [0, 0], sizes = [4, 6], strides = [1, 1]} : vector<4x128xf32> to vector<4x6xf32>
    %c0_46 = arith.constant 0 : index
    %c0_47 = arith.constant 0 : index
    %90 = vector.load %arg15[%c0_46, %c0_47] : memref<4x128xf32, #tpu.memory_space<vmem>>, vector<4x6xf32>
    tpu.vector_store %arg15[%c0_46, %c0_47], %89 {strides = array<i32>} : memref<4x128xf32, #tpu.memory_space<vmem>>, vector<4x6xf32>,
    %91 = vector.extract_strided_slice %84 {offsets = [0, 0], sizes = [4, 6], strides = [1, 1]} : vector<4x128xf32> to vector<4x6xf32>
    %c0_48 = arith.constant 0 : index
    %c8 = arith.constant 8 : index
    %92 = vector.load %arg15[%c0_48, %c8] : memref<4x128xf32, #tpu.memory_space<vmem>>, vector<4x6xf32>
    tpu.vector_store %arg15[%c0_48, %c8], %91 {strides = array<i32>} : memref<4x128xf32, #tpu.memory_space<vmem>>, vector<4x6xf32>,
    %93 = vector.extract_strided_slice %86 {offsets = [0, 0], sizes = [4, 6], strides = [1, 1]} : vector<4x128xf32> to vector<4x6xf32>
    %c0_49 = arith.constant 0 : index
    %c16 = arith.constant 16 : index
    %94 = vector.load %arg15[%c0_49, %c16] : memref<4x128xf32, #tpu.memory_space<vmem>>, vector<4x6xf32>
    tpu.vector_store %arg15[%c0_49, %c16], %93 {strides = array<i32>} : memref<4x128xf32, #tpu.memory_space<vmem>>, vector<4x6xf32>,
    return
  }
}

</mosaic_0001>

<llo_original>
// kernel: tpu_custom_call.1
$region0: #{tpu_custom_call.1}
  #allocation0 [shape = 'u32[]', space=smem, size = 0x4, offset = 0x4, fixed_abs, tag = 'smem constant byte address 0x4 - core index']
  #allocation1 [shape = 'u32[144,128]{1,0:T(1,128)}', space=vmem, size = 0x12000, scoped, tag = 'internal scratch']
  %s0 = inlined_call_operand.hbm [shape: f32[4,8], index: 0, kind: input, shape index: {}]
  %s1 = inlined_call_operand.hbm [shape: f32[4,16], index: 1, kind: input, shape index: {}]
  %s2 = inlined_call_operand.hbm [shape: f32[8,128], index: 2, kind: input, shape index: {}]
  %s3 = inlined_call_operand.hbm [shape: f32[1,128], index: 3, kind: input, shape index: {}]
  %s4 = inlined_call_operand.hbm [shape: bf16[16,512], index: 4, kind: input, shape index: {}]
  %s5 = inlined_call_operand.hbm [shape: bf16[32,512], index: 5, kind: input, shape index: {}]
  %s6 = inlined_call_operand.hbm [shape: f32[1,512], index: 6, kind: input, shape index: {}]
  %s7 = inlined_call_operand.hbm [shape: bf16[32,32], index: 7, kind: input, shape index: {}]
  %s8 = inlined_call_operand.hbm [shape: f32[1,32], index: 8, kind: input, shape index: {}]
  %s9 = inlined_call_operand.vmem [shape: bf16[32,192], index: 9, kind: input, shape index: {}]
  %s10 = inlined_call_operand.vmem [shape: f32[1,192], index: 10, kind: input, shape index: {}]
  %s11 = inlined_call_operand.hbm [shape: bf16[32,128], index: 11, kind: input, shape index: {}]
  %s12 = inlined_call_operand.vmem [shape: f32[1,128], index: 12, kind: input, shape index: {}]
  %s13 = inlined_call_operand.hbm [shape: bf16[32,192], index: 13, kind: input, shape index: {}]
  %s14 = inlined_call_operand.hbm [shape: bf16[192,128], index: 14, kind: input, shape index: {}]
  %s15 = inlined_call_operand.hbm [shape: f32[4,128], index: 15, kind: output, shape index: {}]
  %s16 = sld [smem:[#allocation0]]
  $region118: #{tpu_custom_call.1} parent=0
    _
  %s18 = ssub.s32 1, %s16
  %s19 = scalar_select 0, %s18, %s16
  $region1: #{tpu_custom_call.1} parent=0
    #allocation2 [shape = 'u8[2048]{0}', space=vmem, size = 0x800, scoped, tag = 'input window, operand 0, single buffered']
    #allocation3 [shape = 's32[1]{0}', space=sflag, size = 0x4, scoped, tag = 'scoped memory for tpu_custom_call.1']
    #allocation4 [shape = 's32[1]{0}', space=sflag, size = 0x4, scoped, tag = 'scoped memory for tpu_custom_call.1']
    #allocation5 [shape = 'u8[2048]{0}', space=vmem, size = 0x800, scoped, tag = 'input window, operand 1, single buffered']
    #allocation6 [shape = 's32[1]{0}', space=sflag, size = 0x4, scoped, tag = 'scoped memory for tpu_custom_call.1']
    #allocation7 [shape = 'u8[4096]{0}', space=vmem, size = 0x1000, scoped, tag = 'input window, operand 2, single buffered']
    #allocation8 [shape = 'u8[512]{0}', space=vmem, size = 0x400, scoped, tag = 'input window, operand 3, single buffered']
    #allocation9 [shape = 's32[1]{0}', space=sflag, size = 0x4, scoped, tag = 'scoped memory for tpu_custom_call.1']
    #allocation10 [shape = 'u8[16384]{0}', space=vmem, size = 0x4000, scoped, tag = 'input window, operand 4, single buffered']
    #allocation11 [shape = 'u8[32768]{0}', space=vmem, size = 0x8000, scoped, tag = 'input window, operand 5, single buffered']
    #allocation12 [shape = 's32[1]{0}', space=sflag, size = 0x4, scoped, tag = 'scoped memory for tpu_custom_call.1']
    #allocation13 [shape = 'u8[2048]{0}', space=vmem, size = 0x800, scoped, tag = 'input window, operand 6, single buffered']
    #allocation14 [shape = 'u8[8192]{0}', space=vmem, size = 0x2000, scoped, tag = 'input window, operand 7, single buffered']
    #allocation15 [shape = 's32[1]{0}', space=sflag, size = 0x4, scoped, tag = 'scoped memory for tpu_custom_call.1']
    #allocation16 [shape = 'u8[512]{0}', space=vmem, size = 0x400, scoped, tag = 'input window, operand 8, single buffered']
    #allocation17 [shape = 'u8[8192]{0}', space=vmem, size = 0x2000, scoped, tag = 'input window, operand 11, single buffered']
    #allocation18 [shape = 's32[1]{0}', space=sflag, size = 0x4, scoped, tag = 'scoped memory for tpu_custom_call.1']
    #allocation19 [shape = 'u8[16384]{0}', space=vmem, size = 0x4000, scoped, tag = 'input window, operand 13, single buffered']
    #allocation20 [shape = 'u8[49152]{0}', space=vmem, size = 0xc000, scoped, tag = 'input window, operand 14, single buffered']
    #allocation21 [shape = 's32[1]{0}', space=sflag, size = 0x4, scoped, tag = 'scoped memory for tpu_custom_call.1']
    #allocation22 [shape = 'u8[2048]{0}', space=vmem, size = 0x800, scoped, tag = 'output window, operand 0, single buffered']
    %20 = vsyncpa [#allocation3], 0
    %21 = vsyncpa [#allocation6], 0
    %22 = vsyncpa [#allocation9], 0
    %23 = vsyncpa [#allocation12], 0
    %24 = vsyncpa [#allocation15], 0
    %25 = vsyncpa [#allocation18], 0
    %26 = vsyncpa [#allocation21], 0
    %27 = vsyncpa [#allocation4], 0
    // Predicated region
    $region2: #{tpu_custom_call.1} parent=1 // pred_check
      _
    $region3: #{tpu_custom_call.1} parent=1 // pred_check_branch
      %29 = sbr.rel (0) target = $region5
    $region4: #{tpu_custom_call.1} parent=1 // pred_region
      %s31 = ssub.s32 64, 64
      %32 = vsyncadd [#allocation3], %s31
      %s34 = sshll.u32 [#allocation2], 4
      %s35 = int_to_ptr.vmem [resolvable:$true] %s34
      %37 = dma.hbm_to_vmem [thread:$0]  %s0, 64, %s35, [#allocation3]
    $region5: #{tpu_custom_call.1} parent=1 // pred_fallthru
      _
    // Predicated region
    $region6: #{tpu_custom_call.1} parent=1 // pred_check
      _
    $region7: #{tpu_custom_call.1} parent=1 // pred_check_branch
      %39 = sbr.rel (0) target = $region9
    $region8: #{tpu_custom_call.1} parent=1 // pred_region
      %s41 = ssub.s32 64, 64
      %42 = vsyncadd [#allocation6], %s41
      %s44 = sshll.u32 [#allocation5], 4
      %s45 = int_to_ptr.vmem [resolvable:$true] %s44
      %47 = dma.hbm_to_vmem [thread:$0]  %s1, 64, %s45, [#allocation6]
    $region9: #{tpu_custom_call.1} parent=1 // pred_fallthru
      _
    // Predicated region
    $region10: #{tpu_custom_call.1} parent=1 // pred_check
      _
    $region11: #{tpu_custom_call.1} parent=1 // pred_check_branch
      %49 = sbr.rel (0) target = $region13
    $region12: #{tpu_custom_call.1} parent=1 // pred_region
      %s51 = ssub.s32 128, 128
      %52 = vsyncadd [#allocation6], %s51
      %s54 = sshll.u32 [#allocation7], 4
      %s55 = int_to_ptr.vmem [resolvable:$true] %s54
      %57 = dma.hbm_to_vmem [thread:$0]  %s2, 128, %s55, [#allocation6]
    $region13: #{tpu_custom_call.1} parent=1 // pred_fallthru
      _
    // Predicated region
    $region14: #{tpu_custom_call.1} parent=1 // pred_check
      _
    $region15: #{tpu_custom_call.1} parent=1 // pred_check_branch
      %59 = sbr.rel (0) target = $region17
    $region16: #{tpu_custom_call.1} parent=1 // pred_region
      %s61 = ssub.s32 16, 16
      %62 = vsyncadd [#allocation9], %s61
      %s64 = sshll.u32 [#allocation8], 4
      %s65 = int_to_ptr.vmem [resolvable:$true] %s64
      %67 = dma.hbm_to_vmem [thread:$0]  %s3, 16, %s65, [#allocation9]
    $region17: #{tpu_custom_call.1} parent=1 // pred_fallthru
      _
    // Predicated region
    $region18: #{tpu_custom_call.1} parent=1 // pred_check
      _
    $region19: #{tpu_custom_call.1} parent=1 // pred_check_branch
      %69 = sbr.rel (0) target = $region21
    $region20: #{tpu_custom_call.1} parent=1 // pred_region
      %s71 = ssub.s32 512, 512
      %72 = vsyncadd [#allocation9], %s71
      %s73 = sshll.u32 [#allocation10], 4
      %s74 = int_to_ptr.vmem [resolvable:$true] %s73
      %79 = dma.hbm_to_vmem [thread:$0]  %s4, 512, %s74, [#allocation9], 256, 256, 16
    $region21: #{tpu_custom_call.1} parent=1 // pred_fallthru
      _
    // Predicated region
    $region22: #{tpu_custom_call.1} parent=1 // pred_check
      _
    $region23: #{tpu_custom_call.1} parent=1 // pred_check_branch
      %81 = sbr.rel (0) target = $region25
    $region24: #{tpu_custom_call.1} parent=1 // pred_region
      %s83 = ssub.s32 1024, 1024
      %84 = vsyncadd [#allocation12], %s83
      %s85 = sshll.u32 [#allocation11], 4
      %s86 = int_to_ptr.vmem [resolvable:$true] %s85
      %91 = dma.hbm_to_vmem [thread:$0]  %s5, 1024, %s86, [#allocation12], 256, 256, 16
    $region25: #{tpu_custom_call.1} parent=1 // pred_fallthru
      _
    // Predicated region
    $region26: #{tpu_custom_call.1} parent=1 // pred_check
      _
    $region27: #{tpu_custom_call.1} parent=1 // pred_check_branch
      %93 = sbr.rel (0) target = $region29
    $region28: #{tpu_custom_call.1} parent=1 // pred_region
      %s95 = ssub.s32 64, 64
      %96 = vsyncadd [#allocation12], %s95
      %s98 = sshll.u32 [#allocation13], 4
      %s99 = int_to_ptr.vmem [resolvable:$true] %s98
      %101 = dma.hbm_to_vmem [thread:$0]  %s6, 64, %s99, [#allocation12]
    $region29: #{tpu_custom_call.1} parent=1 // pred_fallthru
      _
    // Predicated region
    $region30: #{tpu_custom_call.1} parent=1 // pred_check
      _
    $region31: #{tpu_custom_call.1} parent=1 // pred_check_branch
      %103 = sbr.rel (0) target = $region33
    $region32: #{tpu_custom_call.1} parent=1 // pred_region
      %s105 = ssub.s32 256, 256
      %106 = vsyncadd [#allocation15], %s105
      %s107 = sshll.u32 [#allocation14], 4
      %s108 = int_to_ptr.vmem [resolvable:$true] %s107
      %113 = dma.hbm_to_vmem [thread:$0]  %s7, 256, %s108, [#allocation15], 64, 64, 4
    $region33: #{tpu_custom_call.1} parent=1 // pred_fallthru
      _
    // Predicated region
    $region34: #{tpu_custom_call.1} parent=1 // pred_check
      _
    $region35: #{tpu_custom_call.1} parent=1 // pred_check_branch
      %115 = sbr.rel (0) target = $region37
    $region36: #{tpu_custom_call.1} parent=1 // pred_region
      %s117 = ssub.s32 16, 16
      %118 = vsyncadd [#allocation15], %s117
      %s120 = sshll.u32 [#allocation16], 4
      %s121 = int_to_ptr.vmem [resolvable:$true] %s120
      %123 = dma.hbm_to_vmem [thread:$0]  %s8, 16, %s121, [#allocation15]
    $region37: #{tpu_custom_call.1} parent=1 // pred_fallthru
      _
    // Predicated region
    $region38: #{tpu_custom_call.1} parent=1 // pred_check
      _
    $region39: #{tpu_custom_call.1} parent=1 // pred_check_branch
      %125 = sbr.rel (0) target = $region41
    $region40: #{tpu_custom_call.1} parent=1 // pred_region
      _
    $region41: #{tpu_custom_call.1} parent=1 // pred_fallthru
      _
    // Predicated region
    $region42: #{tpu_custom_call.1} parent=1 // pred_check
      _
    $region43: #{tpu_custom_call.1} parent=1 // pred_check_branch
      %127 = sbr.rel (0) target = $region45
    $region44: #{tpu_custom_call.1} parent=1 // pred_region
      _
    $region45: #{tpu_custom_call.1} parent=1 // pred_fallthru
      _
    // Predicated region
    $region46: #{tpu_custom_call.1} parent=1 // pred_check
      _
    $region47: #{tpu_custom_call.1} parent=1 // pred_check_branch
      %129 = sbr.rel (0) target = $region49
    $region48: #{tpu_custom_call.1} parent=1 // pred_region
      %s131 = ssub.s32 256, 256
      %132 = vsyncadd [#allocation18], %s131
      %s133 = sshll.u32 [#allocation17], 4
      %s134 = int_to_ptr.vmem [resolvable:$true] %s133
      %139 = dma.hbm_to_vmem [thread:$0]  %s11, 256, %s134, [#allocation18], 64, 64, 4
    $region49: #{tpu_custom_call.1} parent=1 // pred_fallthru
      _
    // Predicated region
    $region50: #{tpu_custom_call.1} parent=1 // pred_check
      _
    $region51: #{tpu_custom_call.1} parent=1 // pred_check_branch
      %141 = sbr.rel (0) target = $region53
    $region52: #{tpu_custom_call.1} parent=1 // pred_region
      _
    $region53: #{tpu_custom_call.1} parent=1 // pred_fallthru
      _
    // Predicated region
    $region54: #{tpu_custom_call.1} parent=1 // pred_check
      _
    $region55: #{tpu_custom_call.1} parent=1 // pred_check_branch
      %143 = sbr.rel (0) target = $region57
    $region56: #{tpu_custom_call.1} parent=1 // pred_region
      %s145 = ssub.s32 512, 512
      %146 = vsyncadd [#allocation18], %s145
      %s147 = sshll.u32 [#allocation19], 4
      %s148 = int_to_ptr.vmem [resolvable:$true] %s147
      %153 = dma.hbm_to_vmem [thread:$0]  %s13, 512, %s148, [#allocation18], 128, 128, 8
    $region57: #{tpu_custom_call.1} parent=1 // pred_fallthru
      _
    // Predicated region
    $region58: #{tpu_custom_call.1} parent=1 // pred_check
      _
    $region59: #{tpu_custom_call.1} parent=1 // pred_check_branch
      %155 = sbr.rel (0) target = $region61
    $region60: #{tpu_custom_call.1} parent=1 // pred_region
      %s157 = ssub.s32 1536, 1536
      %158 = vsyncadd [#allocation21], %s157
      %s159 = sshll.u32 [#allocation20], 4
      %s160 = int_to_ptr.vmem [resolvable:$true] %s159
      %165 = dma.hbm_to_vmem [thread:$0]  %s14, 1536, %s160, [#allocation21], 64, 64, 4
    $region61: #{tpu_custom_call.1} parent=1 // pred_fallthru
      _
    // Predicated region
    $region62: #{tpu_custom_call.1} parent=1 // pred_check
      _
    $region63: #{tpu_custom_call.1} parent=1 // pred_check_branch
      %167 = sbr.rel (0) target = $region65
    $region64: #{tpu_custom_call.1} parent=1 // pred_region
      %168 = dma.done [#allocation3], 64
    $region65: #{tpu_custom_call.1} parent=1 // pred_fallthru
      _
    // Predicated region
    $region66: #{tpu_custom_call.1} parent=1 // pred_check
      _
    $region67: #{tpu_custom_call.1} parent=1 // pred_check_branch
      %170 = sbr.rel (0) target = $region69
    $region68: #{tpu_custom_call.1} parent=1 // pred_region
      %171 = dma.done [#allocation6], 64
    $region69: #{tpu_custom_call.1} parent=1 // pred_fallthru
      _
    // Predicated region
    $region70: #{tpu_custom_call.1} parent=1 // pred_check
      _
    $region71: #{tpu_custom_call.1} parent=1 // pred_check_branch
      %173 = sbr.rel (0) target = $region73
    $region72: #{tpu_custom_call.1} parent=1 // pred_region
      %174 = dma.done [#allocation6], 128
    $region73: #{tpu_custom_call.1} parent=1 // pred_fallthru
      _
    // Predicated region
    $region74: #{tpu_custom_call.1} parent=1 // pred_check
      _
    $region75: #{tpu_custom_call.1} parent=1 // pred_check_branch
      %176 = sbr.rel (0) target = $region77
    $region76: #{tpu_custom_call.1} parent=1 // pred_region
      %177 = dma.done [#allocation9], 16
    $region77: #{tpu_custom_call.1} parent=1 // pred_fallthru
      _
    // Predicated region
    $region78: #{tpu_custom_call.1} parent=1 // pred_check
      _
    $region79: #{tpu_custom_call.1} parent=1 // pred_check_branch
      %179 = sbr.rel (0) target = $region81
    $region80: #{tpu_custom_call.1} parent=1 // pred_region
      %180 = dma.done [#allocation9], 512
    $region81: #{tpu_custom_call.1} parent=1 // pred_fallthru
      _
    // Predicated region
    $region82: #{tpu_custom_call.1} parent=1 // pred_check
      _
    $region83: #{tpu_custom_call.1} parent=1 // pred_check_branch
      %182 = sbr.rel (0) target = $region85
    $region84: #{tpu_custom_call.1} parent=1 // pred_region
      %183 = dma.done [#allocation12], 1024
    $region85: #{tpu_custom_call.1} parent=1 // pred_fallthru
      _
    // Predicated region
    $region86: #{tpu_custom_call.1} parent=1 // pred_check
      _
    $region87: #{tpu_custom_call.1} parent=1 // pred_check_branch
      %185 = sbr.rel (0) target = $region89
    $region88: #{tpu_custom_call.1} parent=1 // pred_region
      %186 = dma.done [#allocation12], 64
    $region89: #{tpu_custom_call.1} parent=1 // pred_fallthru
      _
    // Predicated region
    $region90: #{tpu_custom_call.1} parent=1 // pred_check
      _
    $region91: #{tpu_custom_call.1} parent=1 // pred_check_branch
      %188 = sbr.rel (0) target = $region93
    $region92: #{tpu_custom_call.1} parent=1 // pred_region
      %189 = dma.done [#allocation15], 256
    $region93: #{tpu_custom_call.1} parent=1 // pred_fallthru
      _
    // Predicated region
    $region94: #{tpu_custom_call.1} parent=1 // pred_check
      _
    $region95: #{tpu_custom_call.1} parent=1 // pred_check_branch
      %191 = sbr.rel (0) target = $region97
    $region96: #{tpu_custom_call.1} parent=1 // pred_region
      %192 = dma.done [#allocation15], 16
    $region97: #{tpu_custom_call.1} parent=1 // pred_fallthru
      _
    // Predicated region
    $region98: #{tpu_custom_call.1} parent=1 // pred_check
      _
    $region99: #{tpu_custom_call.1} parent=1 // pred_check_branch
      %194 = sbr.rel (0) target = $region101
    $region100: #{tpu_custom_call.1} parent=1 // pred_region
      %195 = dma.done [#allocation18], 256
    $region101: #{tpu_custom_call.1} parent=1 // pred_fallthru
      _
    // Predicated region
    $region102: #{tpu_custom_call.1} parent=1 // pred_check
      _
    $region103: #{tpu_custom_call.1} parent=1 // pred_check_branch
      %197 = sbr.rel (0) target = $region105
    $region104: #{tpu_custom_call.1} parent=1 // pred_region
      %198 = dma.done [#allocation18], 512
    $region105: #{tpu_custom_call.1} parent=1 // pred_fallthru
      _
    // Predicated region
    $region106: #{tpu_custom_call.1} parent=1 // pred_check
      _
    $region107: #{tpu_custom_call.1} parent=1 // pred_check_branch
      %200 = sbr.rel (0) target = $region109
    $region108: #{tpu_custom_call.1} parent=1 // pred_region
      %201 = dma.done [#allocation21], 1536
    $region109: #{tpu_custom_call.1} parent=1 // pred_fallthru
      _
    %v202 = vld [vmem:[#allocation2] sm:$0xf]
    %v203 = vld [vmem:[#allocation7] sm:$0xff]
    %v204 = vld [vmem:[#allocation8] sm:$0x1]
    %v206 = vlaneseq
    %v207 = vshrl.u32 %v206, 7
    %v208 = vsub.s32 0, %v207
    %v209 = vrot.slane %v204, %v208
    %vm211 = vcmask 64512
    %v213 = vsel %vm211, %v202, 0
    %215 = vmatprep.subr.mxu0 0.0
    %216 = vmatpush1.msra.mxu0 %v203
    %217 = vmatprep.subr.mxu0 0.0
    %218 = vmatpush1.msra.mxu0 0.0
    %219 = vmatprep.subr.mxu0 0.0
    %220 = vmatpush1.msra.mxu0 0.0
    %221 = vmatprep.subr.mxu0 0.0
    %222 = vmatpush1.msra.mxu0 0.0
    %223 = vmatprep.subr.mxu0 0.0
    %224 = vmatpush1.msra.mxu0 0.0
    %225 = vmatprep.subr.mxu0 0.0
    %226 = vmatpush1.msra.mxu0 0.0
    %227 = vmatprep.subr.mxu0 0.0
    %228 = vmatpush1.msra.mxu0 0.0
    %229 = vmatprep.subr.mxu0 0.0
    %230 = vmatpush1.msra.mxu0 0.0
    %231 = vmatprep.subr.mxu0 0.0
    %232 = vmatpush1.msra.mxu0 0.0
    %233 = vmatprep.subr.mxu0 0.0
    %234 = vmatpush1.msra.mxu0 0.0
    %235 = vmatprep.subr.mxu0 0.0
    %236 = vmatpush1.msra.mxu0 0.0
    %237 = vmatprep.subr.mxu0 0.0
    %238 = vmatpush1.msra.mxu0 0.0
    %239 = vmatprep.subr.mxu0 0.0
    %240 = vmatpush1.msra.mxu0 0.0
    %241 = vmatprep.subr.mxu0 0.0
    %242 = vmatpush1.msra.mxu0 0.0
    %243 = vmatprep.subr.mxu0 0.0
    %244 = vmatpush1.msra.mxu0 0.0
    %245 = vmatprep.subr.mxu0 0.0
    %246 = vmatpush1.msra.mxu0 0.0
    %247 = vmatprep.subr.mxu0 0.0
    %248 = vmatpush1.msra.mxu0 0.0
    %249 = vmatprep.subr.mxu0 0.0
    %250 = vmatpush1.msra.mxu0 0.0
    %251 = vmatprep.subr.mxu0 0.0
    %252 = vmatpush1.msra.mxu0 0.0
    %253 = vmatprep.subr.mxu0 0.0
    %254 = vmatpush1.msra.mxu0 0.0
    %255 = vmatprep.subr.mxu0 0.0
    %256 = vmatpush1.msra.mxu0 0.0
    %257 = vmatprep.subr.mxu0 0.0
    %258 = vmatpush1.msra.mxu0 0.0
    %259 = vmatprep.subr.mxu0 0.0
    %260 = vmatpush1.msra.mxu0 0.0
    %261 = vmatprep.subr.mxu0 0.0
    %262 = vmatpush1.msra.mxu0 0.0
    %263 = vmatprep.subr.mxu0 0.0
    %264 = vmatpush1.msra.mxu0 0.0
    %265 = vmatprep.subr.mxu0 0.0
    %266 = vmatpush1.msra.mxu0 0.0
    %267 = vmatprep.subr.mxu0 0.0
    %268 = vmatpush1.msra.mxu0 0.0
    %269 = vmatprep.subr.mxu0 0.0
    %270 = vmatpush1.msra.mxu0 0.0
    %271 = vmatprep.subr.mxu0 0.0
    %272 = vmatpush1.msra.mxu0 0.0
    %273 = vmatprep.subr.mxu0 0.0
    %274 = vmatpush1.msra.mxu0 0.0
    %275 = vmatprep.subr.mxu0 0.0
    %276 = vmatpush1.msra.mxu0 0.0
    %277 = vmatprep.subr.mxu0 0.0
    %278 = vmatpush1.msra.mxu0 0.0
    %279 = vmatprep.mubr.f32.mxu0 0.0
    %280 = vmatmul.mubr.f32.gmra.mrb[0].mxu0 %v213
    %v281 = vpop.f32.mrb[0].mxu0
    %v282 = vadd.f32 %v209, %v281
    %v283 = vpop.f32.mrb[0].mxu0
    %284 = vdwg.mxu0
    %v285 = vmax.f32 %v282, 0.0
    %v286 = vld [vmem:[#allocation5] sm:$0xf]
    %v287 = vld [vmem:[#allocation10] sm:$0xff]
    %v288 = vld [vmem:[#allocation10 + $0x8] sm:$0xff]
    %v289 = vld [vmem:[#allocation10 + $0x10] sm:$0xff]
    %v290 = vld [vmem:[#allocation10 + $0x18] sm:$0xff]
    %v291 = vunpack.c.l.bf16 %v287
    %v292 = vunpack.c.h.bf16 %v287
    %v293 = vunpack.c.l.bf16 %v288
    %v294 = vunpack.c.h.bf16 %v288
    %v295 = vunpack.c.l.bf16 %v289
    %v296 = vunpack.c.h.bf16 %v289
    %v297 = vunpack.c.l.bf16 %v290
    %v298 = vunpack.c.h.bf16 %v290
    %vm299 = vcmask 130048
    %v301 = vsel %vm299, %v286, 0
    %303 = vmatprep.subr.mxu0 %v292
    %304 = vmatpush1.msra.mxu0 %v291
    %305 = vmatprep.subr.mxu0 %v296
    %306 = vmatpush1.msra.mxu0 %v295
    %307 = vmatprep.subr.mxu0 0.0
    %308 = vmatpush1.msra.mxu0 0.0
    %309 = vmatprep.subr.mxu0 0.0
    %310 = vmatpush1.msra.mxu0 0.0
    %311 = vmatprep.subr.mxu0 0.0
    %312 = vmatpush1.msra.mxu0 0.0
    %313 = vmatprep.subr.mxu0 0.0
    %314 = vmatpush1.msra.mxu0 0.0
    %315 = vmatprep.subr.mxu0 0.0
    %316 = vmatpush1.msra.mxu0 0.0
    %317 = vmatprep.subr.mxu0 0.0
    %318 = vmatpush1.msra.mxu0 0.0
    %319 = vmatprep.subr.mxu0 0.0
    %320 = vmatpush1.msra.mxu0 0.0
    %321 = vmatprep.subr.mxu0 0.0
    %322 = vmatpush1.msra.mxu0 0.0
    %323 = vmatprep.subr.mxu0 0.0
    %324 = vmatpush1.msra.mxu0 0.0
    %325 = vmatprep.subr.mxu0 0.0
    %326 = vmatpush1.msra.mxu0 0.0
    %327 = vmatprep.subr.mxu0 0.0
    %328 = vmatpush1.msra.mxu0 0.0
    %329 = vmatprep.subr.mxu0 0.0
    %330 = vmatpush1.msra.mxu0 0.0
    %331 = vmatprep.subr.mxu0 0.0
    %332 = vmatpush1.msra.mxu0 0.0
    %333 = vmatprep.subr.mxu0 0.0
    %334 = vmatpush1.msra.mxu0 0.0
    %335 = vmatprep.subr.mxu0 0.0
    %336 = vmatpush1.msra.mxu0 0.0
    %337 = vmatprep.subr.mxu0 0.0
    %338 = vmatpush1.msra.mxu0 0.0
    %339 = vmatprep.subr.mxu0 0.0
    %340 = vmatpush1.msra.mxu0 0.0
    %341 = vmatprep.subr.mxu0 0.0
    %342 = vmatpush1.msra.mxu0 0.0
    %343 = vmatprep.subr.mxu0 0.0
    %344 = vmatpush1.msra.mxu0 0.0
    %345 = vmatprep.subr.mxu0 0.0
    %346 = vmatpush1.msra.mxu0 0.0
    %347 = vmatprep.subr.mxu0 0.0
    %348 = vmatpush1.msra.mxu0 0.0
    %349 = vmatprep.subr.mxu0 0.0
    %350 = vmatpush1.msra.mxu0 0.0
    %351 = vmatprep.subr.mxu0 0.0
    %352 = vmatpush1.msra.mxu0 0.0
    %353 = vmatprep.subr.mxu0 0.0
    %354 = vmatpush1.msra.mxu0 0.0
    %355 = vmatprep.subr.mxu0 0.0
    %356 = vmatpush1.msra.mxu0 0.0
    %357 = vmatprep.subr.mxu0 0.0
    %358 = vmatpush1.msra.mxu0 0.0
    %359 = vmatprep.subr.mxu0 0.0
    %360 = vmatpush1.msra.mxu0 0.0
    %361 = vmatprep.subr.mxu0 0.0
    %362 = vmatpush1.msra.mxu0 0.0
    %363 = vmatprep.subr.mxu0 0.0
    %364 = vmatpush1.msra.mxu0 0.0
    %365 = vmatprep.subr.mxu0 0.0
    %366 = vmatpush1.msra.mxu0 0.0
    %367 = vmatprep.mubr.f32.mxu0 0.0
    %368 = vmatmul.mubr.f32.gmra.mrb[0].mxu0 %v301
    %v369 = vpop.f32.mrb[0].mxu0
    %v370 = vadd.f32 0.0, %v369
    %v371 = vpop.f32.mrb[0].mxu0
    %v372 = vadd.f32 0.0, %v371
    %373 = vdwg.mxu0
    %374 = vmatprep.subr.mxu0 %v294
    %375 = vmatpush1.msra.mxu0 %v293
    %376 = vmatprep.subr.mxu0 %v298
    %377 = vmatpush1.msra.mxu0 %v297
    %378 = vmatprep.subr.mxu0 0.0
    %379 = vmatpush1.msra.mxu0 0.0
    %380 = vmatprep.subr.mxu0 0.0
    %381 = vmatpush1.msra.mxu0 0.0
    %382 = vmatprep.subr.mxu0 0.0
    %383 = vmatpush1.msra.mxu0 0.0
    %384 = vmatprep.subr.mxu0 0.0
    %385 = vmatpush1.msra.mxu0 0.0
    %386 = vmatprep.subr.mxu0 0.0
    %387 = vmatpush1.msra.mxu0 0.0
    %388 = vmatprep.subr.mxu0 0.0
    %389 = vmatpush1.msra.mxu0 0.0
    %390 = vmatprep.subr.mxu0 0.0
    %391 = vmatpush1.msra.mxu0 0.0
    %392 = vmatprep.subr.mxu0 0.0
    %393 = vmatpush1.msra.mxu0 0.0
    %394 = vmatprep.subr.mxu0 0.0
    %395 = vmatpush1.msra.mxu0 0.0
    %396 = vmatprep.subr.mxu0 0.0
    %397 = vmatpush1.msra.mxu0 0.0
    %398 = vmatprep.subr.mxu0 0.0
    %399 = vmatpush1.msra.mxu0 0.0
    %400 = vmatprep.subr.mxu0 0.0
    %401 = vmatpush1.msra.mxu0 0.0
    %402 = vmatprep.subr.mxu0 0.0
    %403 = vmatpush1.msra.mxu0 0.0
    %404 = vmatprep.subr.mxu0 0.0
    %405 = vmatpush1.msra.mxu0 0.0
    %406 = vmatprep.subr.mxu0 0.0
    %407 = vmatpush1.msra.mxu0 0.0
    %408 = vmatprep.subr.mxu0 0.0
    %409 = vmatpush1.msra.mxu0 0.0
    %410 = vmatprep.subr.mxu0 0.0
    %411 = vmatpush1.msra.mxu0 0.0
    %412 = vmatprep.subr.mxu0 0.0
    %413 = vmatpush1.msra.mxu0 0.0
    %414 = vmatprep.subr.mxu0 0.0
    %415 = vmatpush1.msra.mxu0 0.0
    %416 = vmatprep.subr.mxu0 0.0
    %417 = vmatpush1.msra.mxu0 0.0
    %418 = vmatprep.subr.mxu0 0.0
    %419 = vmatpush1.msra.mxu0 0.0
    %420 = vmatprep.subr.mxu0 0.0
    %421 = vmatpush1.msra.mxu0 0.0
    %422 = vmatprep.subr.mxu0 0.0
    %423 = vmatpush1.msra.mxu0 0.0
    %424 = vmatprep.subr.mxu0 0.0
    %425 = vmatpush1.msra.mxu0 0.0
    %426 = vmatprep.subr.mxu0 0.0
    %427 = vmatpush1.msra.mxu0 0.0
    %428 = vmatprep.subr.mxu0 0.0
    %429 = vmatpush1.msra.mxu0 0.0
    %430 = vmatprep.subr.mxu0 0.0
    %431 = vmatpush1.msra.mxu0 0.0
    %432 = vmatprep.subr.mxu0 0.0
    %433 = vmatpush1.msra.mxu0 0.0
    %434 = vmatprep.subr.mxu0 0.0
    %435 = vmatpush1.msra.mxu0 0.0
    %436 = vmatprep.subr.mxu0 0.0
    %437 = vmatpush1.msra.mxu0 0.0
    %438 = vmatprep.mubr.f32.mxu0 0.0
    %439 = vmatmul.mubr.f32.gmra.mrb[0].mxu0 %v301
    %v440 = vpop.f32.mrb[0].mxu0
    %v441 = vadd.f32 0.0, %v440
    %v442 = vpop.f32.mrb[0].mxu0
    %v443 = vadd.f32 0.0, %v442
    %444 = vdwg.mxu0
    %v445 = vld [vmem:[#allocation11] sm:$0xff]
    %v446 = vld [vmem:[#allocation11 + $0x8] sm:$0xff]
    %v447 = vld [vmem:[#allocation11 + $0x10] sm:$0xff]
    %v448 = vld [vmem:[#allocation11 + $0x18] sm:$0xff]
    %v449 = vld [vmem:[#allocation11 + $0x20] sm:$0xff]
    %v450 = vld [vmem:[#allocation11 + $0x28] sm:$0xff]
    %v451 = vld [vmem:[#allocation11 + $0x30] sm:$0xff]
    %v452 = vld [vmem:[#allocation11 + $0x38] sm:$0xff]
    %v453 = vld [vmem:[#allocation13] sm:$0xf]
    %v454 = vld [vmem:[#allocation14] sm:$0xf]
    %v455 = vld [vmem:[#allocation14 + $0x4] sm:$0xf]
    %v456 = vld [vmem:[#allocation14 + $0x8] sm:$0xf]
    %v457 = vld [vmem:[#allocation14 + $0xc] sm:$0xf]
    %v458 = vld [vmem:[#allocation16] sm:$0x1]
    %v459 = vld [vmem:[%s9] sm:$0xff]
    %v460 = vld [vmem:[%s9 + $0x8] sm:$0xff]
    %v461 = vld [vmem:[%s9 + $0x10] sm:$0xff]
    %v462 = vld [vmem:[%s9 + $0x18] sm:$0xff]
    %v463 = vld [vmem:[%s10] sm:$0x3]
    %v464 = vld [vmem:[#allocation17] sm:$0xf]
    %v465 = vld [vmem:[#allocation17 + $0x4] sm:$0xf]
    %v466 = vld [vmem:[#allocation17 + $0x8] sm:$0xf]
    %v467 = vld [vmem:[#allocation17 + $0xc] sm:$0xf]
    %v468 = vld [vmem:[%s12] sm:$0x1]
    %v469 = vld [vmem:[#allocation19] sm:$0xff]
    %v470 = vld [vmem:[#allocation19 + $0x8] sm:$0xff]
    %v471 = vld [vmem:[#allocation19 + $0x10] sm:$0xff]
    %v472 = vld [vmem:[#allocation19 + $0x18] sm:$0xff]
    %v473 = vld [vmem:[#allocation20] sm:$0xf]
    %v474 = vld [vmem:[#allocation20 + $0x4] sm:$0xf]
    %v475 = vld [vmem:[#allocation20 + $0x8] sm:$0xf]
    %v476 = vld [vmem:[#allocation20 + $0xc] sm:$0xf]
    %v477 = vld [vmem:[#allocation20 + $0x10] sm:$0xf]
    %v478 = vld [vmem:[#allocation20 + $0x14] sm:$0xf]
    %v479 = vld [vmem:[#allocation20 + $0x18] sm:$0xf]
    %v480 = vld [vmem:[#allocation20 + $0x1c] sm:$0xf]
    %v481 = vld [vmem:[#allocation20 + $0x20] sm:$0xf]
    %v482 = vld [vmem:[#allocation20 + $0x24] sm:$0xf]
    %v483 = vld [vmem:[#allocation20 + $0x28] sm:$0xf]
    %v484 = vld [vmem:[#allocation20 + $0x2c] sm:$0xf]
    %v485 = vld [vmem:[#allocation20 + $0x30] sm:$0xf]
    %v486 = vld [vmem:[#allocation20 + $0x34] sm:$0xf]
    %v487 = vld [vmem:[#allocation20 + $0x38] sm:$0xf]
    %v488 = vld [vmem:[#allocation20 + $0x3c] sm:$0xf]
    %v489 = vld [vmem:[#allocation20 + $0x40] sm:$0xf]
    %v490 = vld [vmem:[#allocation20 + $0x44] sm:$0xf]
    %v491 = vld [vmem:[#allocation20 + $0x48] sm:$0xf]
    %v492 = vld [vmem:[#allocation20 + $0x4c] sm:$0xf]
    %v493 = vld [vmem:[#allocation20 + $0x50] sm:$0xf]
    %v494 = vld [vmem:[#allocation20 + $0x54] sm:$0xf]
    %v495 = vld [vmem:[#allocation20 + $0x58] sm:$0xf]
    %v496 = vld [vmem:[#allocation20 + $0x5c] sm:$0xf]
    %v497 = vunpack.c.l.bf16 %v445
    %v498 = vunpack.c.h.bf16 %v445
    %v499 = vunpack.c.l.bf16 %v446
    %v500 = vunpack.c.h.bf16 %v446
    %v501 = vunpack.c.l.bf16 %v447
    %v502 = vunpack.c.h.bf16 %v447
    %v503 = vunpack.c.l.bf16 %v448
    %v504 = vunpack.c.h.bf16 %v448
    %v505 = vunpack.c.l.bf16 %v449
    %v506 = vunpack.c.h.bf16 %v449
    %v507 = vunpack.c.l.bf16 %v450
    %v508 = vunpack.c.h.bf16 %v450
    %v509 = vunpack.c.l.bf16 %v451
    %v510 = vunpack.c.h.bf16 %v451
    %v511 = vunpack.c.l.bf16 %v452
    %v512 = vunpack.c.h.bf16 %v452
    %v514 = vlaneseq
    %v515 = vshrl.u32 %v514, 7
    %v516 = vsub.s32 0, %v515
    %v517 = vrot.slane %v453, %v516
    %v518 = vlaneseq
    %v519 = vshrl.u32 %v518, 7
    %v520 = vsub.s32 1, %v519
    %v521 = vrot.slane %v453, %v520
    %v522 = vlaneseq
    %v523 = vshrl.u32 %v522, 7
    %v524 = vsub.s32 2, %v523
    %v525 = vrot.slane %v453, %v524
    %v526 = vlaneseq
    %v527 = vshrl.u32 %v526, 7
    %v528 = vsub.s32 3, %v527
    %v529 = vrot.slane %v453, %v528
    %vm534 = vcmask 261120
    %v536 = vsel %vm534, %v285, 0
    %538 = vmatprep.subr.mxu0 %v498
    %539 = vmatpush1.msra.mxu0 %v497
    %540 = vmatprep.subr.mxu0 %v502
    %541 = vmatpush1.msra.mxu0 %v501
    %542 = vmatprep.subr.mxu0 %v506
    %543 = vmatpush1.msra.mxu0 %v505
    %544 = vmatprep.subr.mxu0 %v510
    %545 = vmatpush1.msra.mxu0 %v509
    %546 = vmatprep.subr.mxu0 0.0
    %547 = vmatpush1.msra.mxu0 0.0
    %548 = vmatprep.subr.mxu0 0.0
    %549 = vmatpush1.msra.mxu0 0.0
    %550 = vmatprep.subr.mxu0 0.0
    %551 = vmatpush1.msra.mxu0 0.0
    %552 = vmatprep.subr.mxu0 0.0
    %553 = vmatpush1.msra.mxu0 0.0
    %554 = vmatprep.subr.mxu0 0.0
    %555 = vmatpush1.msra.mxu0 0.0
    %556 = vmatprep.subr.mxu0 0.0
    %557 = vmatpush1.msra.mxu0 0.0
    %558 = vmatprep.subr.mxu0 0.0
    %559 = vmatpush1.msra.mxu0 0.0
    %560 = vmatprep.subr.mxu0 0.0
    %561 = vmatpush1.msra.mxu0 0.0
    %562 = vmatprep.subr.mxu0 0.0
    %563 = vmatpush1.msra.mxu0 0.0
    %564 = vmatprep.subr.mxu0 0.0
    %565 = vmatpush1.msra.mxu0 0.0
    %566 = vmatprep.subr.mxu0 0.0
    %567 = vmatpush1.msra.mxu0 0.0
    %568 = vmatprep.subr.mxu0 0.0
    %569 = vmatpush1.msra.mxu0 0.0
    %570 = vmatprep.subr.mxu0 0.0
    %571 = vmatpush1.msra.mxu0 0.0
    %572 = vmatprep.subr.mxu0 0.0
    %573 = vmatpush1.msra.mxu0 0.0
    %574 = vmatprep.subr.mxu0 0.0
    %575 = vmatpush1.msra.mxu0 0.0
    %576 = vmatprep.subr.mxu0 0.0
    %577 = vmatpush1.msra.mxu0 0.0
    %578 = vmatprep.subr.mxu0 0.0
    %579 = vmatpush1.msra.mxu0 0.0
    %580 = vmatprep.subr.mxu0 0.0
    %581 = vmatpush1.msra.mxu0 0.0
    %582 = vmatprep.subr.mxu0 0.0
    %583 = vmatpush1.msra.mxu0 0.0
    %584 = vmatprep.subr.mxu0 0.0
    %585 = vmatpush1.msra.mxu0 0.0
    %586 = vmatprep.subr.mxu0 0.0
    %587 = vmatpush1.msra.mxu0 0.0
    %588 = vmatprep.subr.mxu0 0.0
    %589 = vmatpush1.msra.mxu0 0.0
    %590 = vmatprep.subr.mxu0 0.0
    %591 = vmatpush1.msra.mxu0 0.0
    %592 = vmatprep.subr.mxu0 0.0
    %593 = vmatpush1.msra.mxu0 0.0
    %594 = vmatprep.subr.mxu0 0.0
    %595 = vmatpush1.msra.mxu0 0.0
    %596 = vmatprep.subr.mxu0 0.0
    %597 = vmatpush1.msra.mxu0 0.0
    %598 = vmatprep.subr.mxu0 0.0
    %599 = vmatpush1.msra.mxu0 0.0
    %600 = vmatprep.subr.mxu0 0.0
    %601 = vmatpush1.msra.mxu0 0.0
    %602 = vmatprep.mubr.f32.mxu0 0.0
    %603 = vmatmul.mubr.f32.gmra.mrb[0].mxu0 %v536
    %v604 = vpop.f32.mrb[0].mxu0
    %v605 = vadd.f32 %v517, %v604
    %v606 = vpop.f32.mrb[0].mxu0
    %v607 = vadd.f32 %v521, %v606
    %608 = vdwg.mxu0
    %609 = vmatprep.subr.mxu0 %v500
    %610 = vmatpush1.msra.mxu0 %v499
    %611 = vmatprep.subr.mxu0 %v504
    %612 = vmatpush1.msra.mxu0 %v503
    %613 = vmatprep.subr.mxu0 %v508
    %614 = vmatpush1.msra.mxu0 %v507
    %615 = vmatprep.subr.mxu0 %v512
    %616 = vmatpush1.msra.mxu0 %v511
    %617 = vmatprep.subr.mxu0 0.0
    %618 = vmatpush1.msra.mxu0 0.0
    %619 = vmatprep.subr.mxu0 0.0
    %620 = vmatpush1.msra.mxu0 0.0
    %621 = vmatprep.subr.mxu0 0.0
    %622 = vmatpush1.msra.mxu0 0.0
    %623 = vmatprep.subr.mxu0 0.0
    %624 = vmatpush1.msra.mxu0 0.0
    %625 = vmatprep.subr.mxu0 0.0
    %626 = vmatpush1.msra.mxu0 0.0
    %627 = vmatprep.subr.mxu0 0.0
    %628 = vmatpush1.msra.mxu0 0.0
    %629 = vmatprep.subr.mxu0 0.0
    %630 = vmatpush1.msra.mxu0 0.0
    %631 = vmatprep.subr.mxu0 0.0
    %632 = vmatpush1.msra.mxu0 0.0
    %633 = vmatprep.subr.mxu0 0.0
    %634 = vmatpush1.msra.mxu0 0.0
    %635 = vmatprep.subr.mxu0 0.0
    %636 = vmatpush1.msra.mxu0 0.0
    %637 = vmatprep.subr.mxu0 0.0
    %638 = vmatpush1.msra.mxu0 0.0
    %639 = vmatprep.subr.mxu0 0.0
    %640 = vmatpush1.msra.mxu0 0.0
    %641 = vmatprep.subr.mxu0 0.0
    %642 = vmatpush1.msra.mxu0 0.0
    %643 = vmatprep.subr.mxu0 0.0
    %644 = vmatpush1.msra.mxu0 0.0
    %645 = vmatprep.subr.mxu0 0.0
    %646 = vmatpush1.msra.mxu0 0.0
    %647 = vmatprep.subr.mxu0 0.0
    %648 = vmatpush1.msra.mxu0 0.0
    %649 = vmatprep.subr.mxu0 0.0
    %650 = vmatpush1.msra.mxu0 0.0
    %651 = vmatprep.subr.mxu0 0.0
    %652 = vmatpush1.msra.mxu0 0.0
    %653 = vmatprep.subr.mxu0 0.0
    %654 = vmatpush1.msra.mxu0 0.0
    %655 = vmatprep.subr.mxu0 0.0
    %656 = vmatpush1.msra.mxu0 0.0
    %657 = vmatprep.subr.mxu0 0.0
    %658 = vmatpush1.msra.mxu0 0.0
    %659 = vmatprep.subr.mxu0 0.0
    %660 = vmatpush1.msra.mxu0 0.0
    %661 = vmatprep.subr.mxu0 0.0
    %662 = vmatpush1.msra.mxu0 0.0
    %663 = vmatprep.subr.mxu0 0.0
    %664 = vmatpush1.msra.mxu0 0.0
    %665 = vmatprep.subr.mxu0 0.0
    %666 = vmatpush1.msra.mxu0 0.0
    %667 = vmatprep.subr.mxu0 0.0
    %668 = vmatpush1.msra.mxu0 0.0
    %669 = vmatprep.subr.mxu0 0.0
    %670 = vmatpush1.msra.mxu0 0.0
    %671 = vmatprep.subr.mxu0 0.0
    %672 = vmatpush1.msra.mxu0 0.0
    %673 = vmatprep.mubr.f32.mxu0 0.0
    %674 = vmatmul.mubr.f32.gmra.mrb[0].mxu0 %v536
    %v675 = vpop.f32.mrb[0].mxu0
    %v676 = vadd.f32 %v525, %v675
    %v677 = vpop.f32.mrb[0].mxu0
    %v678 = vadd.f32 %v529, %v677
    %679 = vdwg.mxu0
    %v680 = vunpack.c.l.bf16 %v454
    %v681 = vunpack.c.l.bf16 %v455
    %v682 = vunpack.c.l.bf16 %v456
    %v683 = vunpack.c.l.bf16 %v457
    %v685 = vlaneseq
    %v686 = vshrl.u32 %v685, 7
    %v687 = vsub.s32 0, %v686
    %v688 = vrot.slane %v458, %v687
    %690 = vrot.lane.b32.xlu0 %v285, 96
    %v691 = vpop.permute.xlu0 %690
    %v692 = vsel %vm534, %v691, 0
    %694 = vmatprep.subr.mxu0 0.0
    %695 = vmatpush1.msra.mxu0 %v680
    %696 = vmatprep.subr.mxu0 0.0
    %697 = vmatpush1.msra.mxu0 %v681
    %698 = vmatprep.subr.mxu0 0.0
    %699 = vmatpush1.msra.mxu0 %v682
    %700 = vmatprep.subr.mxu0 0.0
    %701 = vmatpush1.msra.mxu0 %v683
    %702 = vmatprep.subr.mxu0 0.0
    %703 = vmatpush1.msra.mxu0 0.0
    %704 = vmatprep.subr.mxu0 0.0
    %705 = vmatpush1.msra.mxu0 0.0
    %706 = vmatprep.subr.mxu0 0.0
    %707 = vmatpush1.msra.mxu0 0.0
    %708 = vmatprep.subr.mxu0 0.0
    %709 = vmatpush1.msra.mxu0 0.0
    %710 = vmatprep.subr.mxu0 0.0
    %711 = vmatpush1.msra.mxu0 0.0
    %712 = vmatprep.subr.mxu0 0.0
    %713 = vmatpush1.msra.mxu0 0.0
    %714 = vmatprep.subr.mxu0 0.0
    %715 = vmatpush1.msra.mxu0 0.0
    %716 = vmatprep.subr.mxu0 0.0
    %717 = vmatpush1.msra.mxu0 0.0
    %718 = vmatprep.subr.mxu0 0.0
    %719 = vmatpush1.msra.mxu0 0.0
    %720 = vmatprep.subr.mxu0 0.0
    %721 = vmatpush1.msra.mxu0 0.0
    %722 = vmatprep.subr.mxu0 0.0
    %723 = vmatpush1.msra.mxu0 0.0
    %724 = vmatprep.subr.mxu0 0.0
    %725 = vmatpush1.msra.mxu0 0.0
    %726 = vmatprep.subr.mxu0 0.0
    %727 = vmatpush1.msra.mxu0 0.0
    %728 = vmatprep.subr.mxu0 0.0
    %729 = vmatpush1.msra.mxu0 0.0
    %730 = vmatprep.subr.mxu0 0.0
    %731 = vmatpush1.msra.mxu0 0.0
    %732 = vmatprep.subr.mxu0 0.0
    %733 = vmatpush1.msra.mxu0 0.0
    %734 = vmatprep.subr.mxu0 0.0
    %735 = vmatpush1.msra.mxu0 0.0
    %736 = vmatprep.subr.mxu0 0.0
    %737 = vmatpush1.msra.mxu0 0.0
    %738 = vmatprep.subr.mxu0 0.0
    %739 = vmatpush1.msra.mxu0 0.0
    %740 = vmatprep.subr.mxu0 0.0
    %741 = vmatpush1.msra.mxu0 0.0
    %742 = vmatprep.subr.mxu0 0.0
    %743 = vmatpush1.msra.mxu0 0.0
    %744 = vmatprep.subr.mxu0 0.0
    %745 = vmatpush1.msra.mxu0 0.0
    %746 = vmatprep.subr.mxu0 0.0
    %747 = vmatpush1.msra.mxu0 0.0
    %748 = vmatprep.subr.mxu0 0.0
    %749 = vmatpush1.msra.mxu0 0.0
    %750 = vmatprep.subr.mxu0 0.0
    %751 = vmatpush1.msra.mxu0 0.0
    %752 = vmatprep.subr.mxu0 0.0
    %753 = vmatpush1.msra.mxu0 0.0
    %754 = vmatprep.subr.mxu0 0.0
    %755 = vmatpush1.msra.mxu0 0.0
    %756 = vmatprep.subr.mxu0 0.0
    %757 = vmatpush1.msra.mxu0 0.0
    %758 = vmatprep.mubr.f32.mxu0 0.0
    %759 = vmatmul.mubr.f32.gmra.mrb[0].mxu0 %v692
    %v760 = vpop.f32.mrb[0].mxu0
    %v761 = vadd.f32 %v688, %v760
    %v762 = vpop.f32.mrb[0].mxu0
    %763 = vdwg.mxu0
    %v764 = vunpack.c.l.bf16 %v459
    %v765 = vunpack.c.h.bf16 %v459
    %v766 = vunpack.c.l.bf16 %v460
    %v767 = vunpack.c.h.bf16 %v460
    %v768 = vunpack.c.l.bf16 %v461
    %v769 = vunpack.c.h.bf16 %v461
    %v770 = vunpack.c.l.bf16 %v462
    %v771 = vunpack.c.h.bf16 %v462
    %v773 = vlaneseq
    %v774 = vshrl.u32 %v773, 7
    %v775 = vsub.s32 0, %v774
    %v776 = vrot.slane %v463, %v775
    %v777 = vlaneseq
    %v778 = vshrl.u32 %v777, 7
    %v779 = vsub.s32 1, %v778
    %v780 = vrot.slane %v463, %v779
    %783 = vrot.lane.b32.xlu0 %v285, 64
    %v784 = vpop.permute.xlu0 %783
    %v785 = vsel %vm534, %v784, 0
    %787 = vmatprep.subr.mxu0 %v765
    %788 = vmatpush1.msra.mxu0 %v764
    %789 = vmatprep.subr.mxu0 %v767
    %790 = vmatpush1.msra.mxu0 %v766
    %791 = vmatprep.subr.mxu0 %v769
    %792 = vmatpush1.msra.mxu0 %v768
    %793 = vmatprep.subr.mxu0 %v771
    %794 = vmatpush1.msra.mxu0 %v770
    %795 = vmatprep.subr.mxu0 0.0
    %796 = vmatpush1.msra.mxu0 0.0
    %797 = vmatprep.subr.mxu0 0.0
    %798 = vmatpush1.msra.mxu0 0.0
    %799 = vmatprep.subr.mxu0 0.0
    %800 = vmatpush1.msra.mxu0 0.0
    %801 = vmatprep.subr.mxu0 0.0
    %802 = vmatpush1.msra.mxu0 0.0
    %803 = vmatprep.subr.mxu0 0.0
    %804 = vmatpush1.msra.mxu0 0.0
    %805 = vmatprep.subr.mxu0 0.0
    %806 = vmatpush1.msra.mxu0 0.0
    %807 = vmatprep.subr.mxu0 0.0
    %808 = vmatpush1.msra.mxu0 0.0
    %809 = vmatprep.subr.mxu0 0.0
    %810 = vmatpush1.msra.mxu0 0.0
    %811 = vmatprep.subr.mxu0 0.0
    %812 = vmatpush1.msra.mxu0 0.0
    %813 = vmatprep.subr.mxu0 0.0
    %814 = vmatpush1.msra.mxu0 0.0
    %815 = vmatprep.subr.mxu0 0.0
    %816 = vmatpush1.msra.mxu0 0.0
    %817 = vmatprep.subr.mxu0 0.0
    %818 = vmatpush1.msra.mxu0 0.0
    %819 = vmatprep.subr.mxu0 0.0
    %820 = vmatpush1.msra.mxu0 0.0
    %821 = vmatprep.subr.mxu0 0.0
    %822 = vmatpush1.msra.mxu0 0.0
    %823 = vmatprep.subr.mxu0 0.0
    %824 = vmatpush1.msra.mxu0 0.0
    %825 = vmatprep.subr.mxu0 0.0
    %826 = vmatpush1.msra.mxu0 0.0
    %827 = vmatprep.subr.mxu0 0.0
    %828 = vmatpush1.msra.mxu0 0.0
    %829 = vmatprep.subr.mxu0 0.0
    %830 = vmatpush1.msra.mxu0 0.0
    %831 = vmatprep.subr.mxu0 0.0
    %832 = vmatpush1.msra.mxu0 0.0
    %833 = vmatprep.subr.mxu0 0.0
    %834 = vmatpush1.msra.mxu0 0.0
    %835 = vmatprep.subr.mxu0 0.0
    %836 = vmatpush1.msra.mxu0 0.0
    %837 = vmatprep.subr.mxu0 0.0
    %838 = vmatpush1.msra.mxu0 0.0
    %839 = vmatprep.subr.mxu0 0.0
    %840 = vmatpush1.msra.mxu0 0.0
    %841 = vmatprep.subr.mxu0 0.0
    %842 = vmatpush1.msra.mxu0 0.0
    %843 = vmatprep.subr.mxu0 0.0
    %844 = vmatpush1.msra.mxu0 0.0
    %845 = vmatprep.subr.mxu0 0.0
    %846 = vmatpush1.msra.mxu0 0.0
    %847 = vmatprep.subr.mxu0 0.0
    %848 = vmatpush1.msra.mxu0 0.0
    %849 = vmatprep.subr.mxu0 0.0
    %850 = vmatpush1.msra.mxu0 0.0
    %851 = vmatprep.mubr.f32.mxu0 0.0
    %852 = vmatmul.mubr.f32.gmra.mrb[0].mxu0 %v785
    %v853 = vpop.f32.mrb[0].mxu0
    %v854 = vadd.f32 %v776, %v853
    %v855 = vpop.f32.mrb[0].mxu0
    %v856 = vadd.f32 %v780, %v855
    %857 = vdwg.mxu0
    %v858 = vunpack.c.l.bf16 %v464
    %v859 = vunpack.c.l.bf16 %v465
    %v860 = vunpack.c.l.bf16 %v466
    %v861 = vunpack.c.l.bf16 %v467
    %v863 = vlaneseq
    %v864 = vshrl.u32 %v863, 7
    %v865 = vsub.s32 0, %v864
    %v866 = vrot.slane %v468, %v865
    %868 = vrot.lane.b32.xlu0 %v285, 32
    %v869 = vpop.permute.xlu0 %868
    %v870 = vsel %vm534, %v869, 0
    %872 = vmatprep.subr.mxu0 0.0
    %873 = vmatpush1.msra.mxu0 %v858
    %874 = vmatprep.subr.mxu0 0.0
    %875 = vmatpush1.msra.mxu0 %v859
    %876 = vmatprep.subr.mxu0 0.0
    %877 = vmatpush1.msra.mxu0 %v860
    %878 = vmatprep.subr.mxu0 0.0
    %879 = vmatpush1.msra.mxu0 %v861
    %880 = vmatprep.subr.mxu0 0.0
    %881 = vmatpush1.msra.mxu0 0.0
    %882 = vmatprep.subr.mxu0 0.0
    %883 = vmatpush1.msra.mxu0 0.0
    %884 = vmatprep.subr.mxu0 0.0
    %885 = vmatpush1.msra.mxu0 0.0
    %886 = vmatprep.subr.mxu0 0.0
    %887 = vmatpush1.msra.mxu0 0.0
    %888 = vmatprep.subr.mxu0 0.0
    %889 = vmatpush1.msra.mxu0 0.0
    %890 = vmatprep.subr.mxu0 0.0
    %891 = vmatpush1.msra.mxu0 0.0
    %892 = vmatprep.subr.mxu0 0.0
    %893 = vmatpush1.msra.mxu0 0.0
    %894 = vmatprep.subr.mxu0 0.0
    %895 = vmatpush1.msra.mxu0 0.0
    %896 = vmatprep.subr.mxu0 0.0
    %897 = vmatpush1.msra.mxu0 0.0
    %898 = vmatprep.subr.mxu0 0.0
    %899 = vmatpush1.msra.mxu0 0.0
    %900 = vmatprep.subr.mxu0 0.0
    %901 = vmatpush1.msra.mxu0 0.0
    %902 = vmatprep.subr.mxu0 0.0
    %903 = vmatpush1.msra.mxu0 0.0
    %904 = vmatprep.subr.mxu0 0.0
    %905 = vmatpush1.msra.mxu0 0.0
    %906 = vmatprep.subr.mxu0 0.0
    %907 = vmatpush1.msra.mxu0 0.0
    %908 = vmatprep.subr.mxu0 0.0
    %909 = vmatpush1.msra.mxu0 0.0
    %910 = vmatprep.subr.mxu0 0.0
    %911 = vmatpush1.msra.mxu0 0.0
    %912 = vmatprep.subr.mxu0 0.0
    %913 = vmatpush1.msra.mxu0 0.0
    %914 = vmatprep.subr.mxu0 0.0
    %915 = vmatpush1.msra.mxu0 0.0
    %916 = vmatprep.subr.mxu0 0.0
    %917 = vmatpush1.msra.mxu0 0.0
    %918 = vmatprep.subr.mxu0 0.0
    %919 = vmatpush1.msra.mxu0 0.0
    %920 = vmatprep.subr.mxu0 0.0
    %921 = vmatpush1.msra.mxu0 0.0
    %922 = vmatprep.subr.mxu0 0.0
    %923 = vmatpush1.msra.mxu0 0.0
    %924 = vmatprep.subr.mxu0 0.0
    %925 = vmatpush1.msra.mxu0 0.0
    %926 = vmatprep.subr.mxu0 0.0
    %927 = vmatpush1.msra.mxu0 0.0
    %928 = vmatprep.subr.mxu0 0.0
    %929 = vmatpush1.msra.mxu0 0.0
    %930 = vmatprep.subr.mxu0 0.0
    %931 = vmatpush1.msra.mxu0 0.0
    %932 = vmatprep.subr.mxu0 0.0
    %933 = vmatpush1.msra.mxu0 0.0
    %934 = vmatprep.subr.mxu0 0.0
    %935 = vmatpush1.msra.mxu0 0.0
    %936 = vmatprep.mubr.f32.mxu0 0.0
    %937 = vmatmul.mubr.f32.gmra.mrb[0].mxu0 %v870
    %v938 = vpop.f32.mrb[0].mxu0
    %v939 = vadd.f32 %v866, %v938
    %v940 = vpop.f32.mrb[0].mxu0
    %941 = vdwg.mxu0
    %v942 = vmul.f32 %v605, %v370
    %v943 = vmul.f32 %v607, %v372
    %v944 = vmul.f32 %v676, %v441
    %v945 = vmul.f32 %v678, %v443
    %v946 = vadd.f32 %v942, %v944
    %v947 = vadd.f32 %v943, %v945
    %v948 = vadd.f32 %v946, %v947
    %950 = vrot.lane.b32.xlu0 %v948, 64
    %v951 = vpop.permute.xlu0 %950
    %v953 = vadd.f32 %v948, %v951
    %955 = vrot.lane.b32.xlu0 %v953, 96
    %v956 = vpop.permute.xlu0 %955
    %v958 = vadd.f32 %v953, %v956
    %v959 = vadd.f32 %v958, %v761
    %v960 = vmax.f32 %v959, 0.0
    %v961 = vunpack.c.l.bf16 %v469
    %v962 = vunpack.c.h.bf16 %v469
    %v963 = vunpack.c.l.bf16 %v470
    %v964 = vunpack.c.h.bf16 %v470
    %v965 = vunpack.c.l.bf16 %v471
    %v966 = vunpack.c.h.bf16 %v471
    %v967 = vunpack.c.l.bf16 %v472
    %v968 = vunpack.c.h.bf16 %v472
    %v970 = vsel %vm534, %v960, 0
    %972 = vmatprep.subr.mxu0 %v962
    %973 = vmatpush1.msra.mxu0 %v961
    %974 = vmatprep.subr.mxu0 %v964
    %975 = vmatpush1.msra.mxu0 %v963
    %976 = vmatprep.subr.mxu0 %v966
    %977 = vmatpush1.msra.mxu0 %v965
    %978 = vmatprep.subr.mxu0 %v968
    %979 = vmatpush1.msra.mxu0 %v967
    %980 = vmatprep.subr.mxu0 0.0
    %981 = vmatpush1.msra.mxu0 0.0
    %982 = vmatprep.subr.mxu0 0.0
    %983 = vmatpush1.msra.mxu0 0.0
    %984 = vmatprep.subr.mxu0 0.0
    %985 = vmatpush1.msra.mxu0 0.0
    %986 = vmatprep.subr.mxu0 0.0
    %987 = vmatpush1.msra.mxu0 0.0
    %988 = vmatprep.subr.mxu0 0.0
    %989 = vmatpush1.msra.mxu0 0.0
    %990 = vmatprep.subr.mxu0 0.0
    %991 = vmatpush1.msra.mxu0 0.0
    %992 = vmatprep.subr.mxu0 0.0
    %993 = vmatpush1.msra.mxu0 0.0
    %994 = vmatprep.subr.mxu0 0.0
    %995 = vmatpush1.msra.mxu0 0.0
    %996 = vmatprep.subr.mxu0 0.0
    %997 = vmatpush1.msra.mxu0 0.0
    %998 = vmatprep.subr.mxu0 0.0
    %999 = vmatpush1.msra.mxu0 0.0
    %1000 = vmatprep.subr.mxu0 0.0
    %1001 = vmatpush1.msra.mxu0 0.0
    %1002 = vmatprep.subr.mxu0 0.0
    %1003 = vmatpush1.msra.mxu0 0.0
    %1004 = vmatprep.subr.mxu0 0.0
    %1005 = vmatpush1.msra.mxu0 0.0
    %1006 = vmatprep.subr.mxu0 0.0
    %1007 = vmatpush1.msra.mxu0 0.0
    %1008 = vmatprep.subr.mxu0 0.0
    %1009 = vmatpush1.msra.mxu0 0.0
    %1010 = vmatprep.subr.mxu0 0.0
    %1011 = vmatpush1.msra.mxu0 0.0
    %1012 = vmatprep.subr.mxu0 0.0
    %1013 = vmatpush1.msra.mxu0 0.0
    %1014 = vmatprep.subr.mxu0 0.0
    %1015 = vmatpush1.msra.mxu0 0.0
    %1016 = vmatprep.subr.mxu0 0.0
    %1017 = vmatpush1.msra.mxu0 0.0
    %1018 = vmatprep.subr.mxu0 0.0
    %1019 = vmatpush1.msra.mxu0 0.0
    %1020 = vmatprep.subr.mxu0 0.0
    %1021 = vmatpush1.msra.mxu0 0.0
    %1022 = vmatprep.subr.mxu0 0.0
    %1023 = vmatpush1.msra.mxu0 0.0
    %1024 = vmatprep.subr.mxu0 0.0
    %1025 = vmatpush1.msra.mxu0 0.0
    %1026 = vmatprep.subr.mxu0 0.0
    %1027 = vmatpush1.msra.mxu0 0.0
    %1028 = vmatprep.subr.mxu0 0.0
    %1029 = vmatpush1.msra.mxu0 0.0
    %1030 = vmatprep.subr.mxu0 0.0
    %1031 = vmatpush1.msra.mxu0 0.0
    %1032 = vmatprep.subr.mxu0 0.0
    %1033 = vmatpush1.msra.mxu0 0.0
    %1034 = vmatprep.subr.mxu0 0.0
    %1035 = vmatpush1.msra.mxu0 0.0
    %1036 = vmatprep.mubr.f32.mxu0 0.0
    %1037 = vmatmul.mubr.f32.gmra.mrb[0].mxu0 %v970
    %v1038 = vpop.f32.mrb[0].mxu0
    %v1039 = vadd.f32 0.0, %v1038
    %v1040 = vpop.f32.mrb[0].mxu0
    %v1041 = vadd.f32 0.0, %v1040
    %1042 = vdwg.mxu0
    %v1043 = vmul.f32 %v1039, %v854
    %v1044 = vmul.f32 %v1041, %v856
    %v1045 = vunpack.c.l.bf16 %v473
    %v1046 = vunpack.c.l.bf16 %v474
    %v1047 = vunpack.c.l.bf16 %v475
    %v1048 = vunpack.c.l.bf16 %v476
    %v1049 = vunpack.c.l.bf16 %v477
    %v1050 = vunpack.c.l.bf16 %v478
    %v1051 = vunpack.c.l.bf16 %v479
    %v1052 = vunpack.c.l.bf16 %v480
    %v1053 = vunpack.c.l.bf16 %v481
    %v1054 = vunpack.c.l.bf16 %v482
    %v1055 = vunpack.c.l.bf16 %v483
    %v1056 = vunpack.c.l.bf16 %v484
    %v1057 = vunpack.c.l.bf16 %v485
    %v1058 = vunpack.c.l.bf16 %v486
    %v1059 = vunpack.c.l.bf16 %v487
    %v1060 = vunpack.c.l.bf16 %v488
    %v1061 = vunpack.c.l.bf16 %v489
    %v1062 = vunpack.c.l.bf16 %v490
    %v1063 = vunpack.c.l.bf16 %v491
    %v1064 = vunpack.c.l.bf16 %v492
    %v1065 = vunpack.c.l.bf16 %v493
    %v1066 = vunpack.c.l.bf16 %v494
    %v1067 = vunpack.c.l.bf16 %v495
    %v1068 = vunpack.c.l.bf16 %v496
    %vm1069 = vcmask 523264
    %v1071 = vsel %vm1069, %v1044, 0
    %1073 = vmatprep.subr.mxu0 0.0
    %1074 = vmatpush1.msra.mxu0 %v1045
    %1075 = vmatprep.subr.mxu0 0.0
    %1076 = vmatpush1.msra.mxu0 %v1046
    %1077 = vmatprep.subr.mxu0 0.0
    %1078 = vmatpush1.msra.mxu0 %v1047
    %1079 = vmatprep.subr.mxu0 0.0
    %1080 = vmatpush1.msra.mxu0 %v1048
    %1081 = vmatprep.subr.mxu0 0.0
    %1082 = vmatpush1.msra.mxu0 %v1049
    %1083 = vmatprep.subr.mxu0 0.0
    %1084 = vmatpush1.msra.mxu0 %v1050
    %1085 = vmatprep.subr.mxu0 0.0
    %1086 = vmatpush1.msra.mxu0 %v1051
    %1087 = vmatprep.subr.mxu0 0.0
    %1088 = vmatpush1.msra.mxu0 %v1052
    %1089 = vmatprep.subr.mxu0 0.0
    %1090 = vmatpush1.msra.mxu0 %v1053
    %1091 = vmatprep.subr.mxu0 0.0
    %1092 = vmatpush1.msra.mxu0 %v1054
    %1093 = vmatprep.subr.mxu0 0.0
    %1094 = vmatpush1.msra.mxu0 %v1055
    %1095 = vmatprep.subr.mxu0 0.0
    %1096 = vmatpush1.msra.mxu0 %v1056
    %1097 = vmatprep.subr.mxu0 0.0
    %1098 = vmatpush1.msra.mxu0 %v1057
    %1099 = vmatprep.subr.mxu0 0.0
    %1100 = vmatpush1.msra.mxu0 %v1058
    %1101 = vmatprep.subr.mxu0 0.0
    %1102 = vmatpush1.msra.mxu0 %v1059
    %1103 = vmatprep.subr.mxu0 0.0
    %1104 = vmatpush1.msra.mxu0 %v1060
    %1105 = vmatprep.subr.mxu0 0.0
    %1106 = vmatpush1.msra.mxu0 %v1061
    %1107 = vmatprep.subr.mxu0 0.0
    %1108 = vmatpush1.msra.mxu0 %v1062
    %1109 = vmatprep.subr.mxu0 0.0
    %1110 = vmatpush1.msra.mxu0 %v1063
    %1111 = vmatprep.subr.mxu0 0.0
    %1112 = vmatpush1.msra.mxu0 %v1064
    %1113 = vmatprep.subr.mxu0 0.0
    %1114 = vmatpush1.msra.mxu0 %v1065
    %1115 = vmatprep.subr.mxu0 0.0
    %1116 = vmatpush1.msra.mxu0 %v1066
    %1117 = vmatprep.subr.mxu0 0.0
    %1118 = vmatpush1.msra.mxu0 %v1067
    %1119 = vmatprep.subr.mxu0 0.0
    %1120 = vmatpush1.msra.mxu0 %v1068
    %1121 = vmatprep.subr.mxu0 0.0
    %1122 = vmatpush1.msra.mxu0 0.0
    %1123 = vmatprep.subr.mxu0 0.0
    %1124 = vmatpush1.msra.mxu0 0.0
    %1125 = vmatprep.subr.mxu0 0.0
    %1126 = vmatpush1.msra.mxu0 0.0
    %1127 = vmatprep.subr.mxu0 0.0
    %1128 = vmatpush1.msra.mxu0 0.0
    %1129 = vmatprep.subr.mxu0 0.0
    %1130 = vmatpush1.msra.mxu0 0.0
    %1131 = vmatprep.subr.mxu0 0.0
    %1132 = vmatpush1.msra.mxu0 0.0
    %1133 = vmatprep.subr.mxu0 0.0
    %1134 = vmatpush1.msra.mxu0 0.0
    %1135 = vmatprep.subr.mxu0 0.0
    %1136 = vmatpush1.msra.mxu0 0.0
    %1137 = vmatprep.mubr.f32.mxu0 %v1071
    %1138 = vmatmul.mubr.f32.gmra.mrb[0].mxu0 %v1043
    %v1139 = vpop.f32.mrb[0].mxu0
    %v1140 = vadd.f32 %v939, %v1139
    %v1141 = vpop.f32.mrb[0].mxu0
    %1142 = vdwg.mxu0
    %v1143 = vlaneseq
    %v1144 = vand.u32 %v1143, 127
    %vm1145 = vcmp.lt.s32.totalorder %v1144, 6
    %v1146 = vsel %vm1145, %v1140, -1e+30
    %vm1147 = vcmask 1043456
    %v1148 = vsel %vm1147, %v1146, -inf
    %1149 = vmax.xlane.f32.xlu0 %v1148
    %v1150 = vpop.xlane.xlu0 %1149
    %v1151 = vsub.f32 %v1146, %v1150
    %v1152 = vmul.f32 %v1151, 1.442695
    %v1153 = vpow.pop %v1152
    %v1154 = vsel %vm1145, %v1153, 0.0
    %v1155 = vsel %vm1147, %v1154, 0.0
    %1156 = vadd.xlane.f32.xlu0 %v1155
    %v1157 = vpop.xlane.xlu0 %1156
    %v1158 = vlog2.pop %v1157
    %v1159 = vmul.f32 %v1158, 0.6931472
    %v1160 = vsub.f32 %v1151, %v1159
    %v1161 = vsel %vm1145, %v1160, 0.0
    %v1162 = vrcp.pop %v1157
    %v1163 = vmul.f32 %v1154, %v1162
    %1164 = vst [vmem:[#allocation22] sm:$0xf] 0.0
    %vm1165 = vcmask 44032
    %1166 = vst.msk [vmem:[#allocation22] sm:$0xf] %vm1165, %v1140
    %1168 = vrot.lane.b32.xlu0 %v1161, 8
    %v1169 = vpop.permute.xlu0 %1168
    %vm1171 = vcmask 109632
    %1172 = vst.msk [vmem:[#allocation22] sm:$0xf] %vm1171, %v1169
    %1174 = vrot.lane.b32.xlu0 %v1163, 16
    %v1175 = vpop.permute.xlu0 %1174
    %vm1177 = vcmask 175232
    %1178 = vst.msk [vmem:[#allocation22] sm:$0xf] %vm1177, %v1175
    // Predicated region
    $region110: #{tpu_custom_call.1} parent=1 // pred_check
      _
    $region111: #{tpu_custom_call.1} parent=1 // pred_check_branch
      %1180 = sbr.rel (0) target = $region113
    $region112: #{tpu_custom_call.1} parent=1 // pred_region
      %s1182 = ssub.s32 64, 64
      %1183 = vsyncadd [#allocation4], %s1182
      %s1185 = sshll.u32 [#allocation22], 4
      %s1186 = int_to_ptr.vmem [resolvable:$true] %s1185
      %1188 = dma.vmem_to_hbm [thread:$0]  %s1186, 64, %s15, [#allocation4]
    $region113: #{tpu_custom_call.1} parent=1 // pred_fallthru
      _
    // Predicated region
    $region114: #{tpu_custom_call.1} parent=1 // pred_check
      _
    $region115: #{tpu_custom_call.1} parent=1 // pred_check_branch
      %1190 = sbr.rel (0) target = $region117
    $region116: #{tpu_custom_call.1} parent=1 // pred_region
      %1191 = dma.done [#allocation4], 64
    $region117: #{tpu_custom_call.1} parent=1 // pred_fallthru
      _
    %1192 = vsyncpa [#allocation3], 1
    %1193 = vsyncpa [#allocation6], 1
    %1194 = vsyncpa [#allocation9], 1
    %1195 = vsyncpa [#allocation12], 1
    %1196 = vsyncpa [#allocation15], 1
    %1197 = vsyncpa [#allocation18], 1
    %1198 = vsyncpa [#allocation21], 1
    %1199 = vsyncpa [#allocation4], 1

</llo_original>
